<compile_context>
chip_gen: v6e
topology: v6e:2x2x1
jax: 0.10.0
libtpu: 0.0.40
codegen_flags: <defaults>
</compile_context>

<pallas_src>
import functools

import jax
import jax.numpy as jnp
from jax.experimental import pallas as pl
from jax.experimental.pallas import tpu as pltpu


def _round_up(x, m):
    return (x + m - 1) // m * m


def _itemsize(dtype):
    return jnp.dtype(dtype).itemsize


def _tpu_params():
    """Best-effort chip detection: (vmem_capacity_bytes, num_tensorcores)."""
    vmem_bytes = 128 << 20
    num_cores = 1
    kind = ""
    try:
        kind = (jax.devices()[0].device_kind or "").lower()
    except Exception:
        kind = ""
    try:
        info = pltpu.get_tpu_info()
        vmem_bytes = int(getattr(info, "vmem_capacity_bytes", vmem_bytes))
    except Exception:
        pass
    k = kind.replace(" ", "")
    if ("v7" in k) or ("7x" in k):
        vmem_bytes = min(vmem_bytes, 64 << 20)   # v7x: 64 MiB per TensorCore
        num_cores = 2
    elif ("v4" in k) or ("v5p" in k):
        num_cores = 2                            # megacore parts
    return vmem_bytes, num_cores


def _fused_vmem_estimate(tile, d_in, d_out, n_exp, chunk_lanes, x_dtype,
                         compute_dtype, const_bufs):
    it_x, it_c = _itemsize(x_dtype), _itemsize(compute_dtype)
    lane_e, lane_o = max(n_exp, 128), max(d_out, 128)
    est = 0
    est += 2 * tile * d_in * it_x                          # x tile (double-buffered)
    est += 2 * tile * d_out * it_x                         # out tile (double-buffered)
    est += const_bufs * d_in * n_exp * 4                   # router W
    est += const_bufs * 8 * 128 * 4                        # router b (tile padded)
    est += const_bufs * d_in * n_exp * d_out * it_c        # fused expert weight slab
    est += const_bufs * max(n_exp, 8) * lane_o * 4         # expert biases (f32)
    # compiler-managed temporaries inside the kernel body:
    est += tile * d_in * it_c                              # compute-dtype cast of x
    est += tile * d_in * 4                                 # router-dtype copy of x
    est += 6 * tile * lane_e * 4                           # logits / top-k temporaries
    est += tile * max(chunk_lanes, 128) * 4                # per-chunk matmul result
    est += 2 * tile * lane_o * 4                           # f32 accumulator
    return est


def _streamed_vmem_estimate(tile, d_in, d_out, n_exp, x_dtype, compute_dtype,
                            const_bufs):
    it_x, it_c = _itemsize(x_dtype), _itemsize(compute_dtype)
    lane_e, lane_o = max(n_exp, 128), max(d_out, 128)
    est = 0
    est += 2 * tile * d_in * it_x                          # x tile
    est += 2 * tile * d_out * it_x                         # out tile
    est += const_bufs * d_in * n_exp * 4                   # router W
    est += const_bufs * 8 * 128 * 4                        # router b
    est += 2 * d_in * d_out * it_c                         # per-expert W (double-buffered)
    est += const_bufs * max(n_exp, 8) * lane_o * 4         # expert biases
    # scratch: cached x cast, gate, accumulator
    est += tile * d_in * it_c + tile * lane_e * 4 + tile * lane_o * 4
    # temporaries (router-dtype x copy, top-k temps, per-expert matmul result)
    est += tile * d_in * 4 + 5 * tile * lane_e * 4 + 2 * tile * lane_o * 4
    return est


def _topk_gate(logits, num_active, *, approx_recip):
    """Dense top-k gate (f32): selected softmax probs renormalized to sum to 1.

    The softmax denominator cancels under top-k renormalization, so selection and
    weighting run directly on exp(logits - max) and are normalized exactly once.
    Tie-break is lowest expert index (same as lax.top_k / torch.topk).
    NOTE: with approx_recip=True the renormalized gates sum to 1 only to ~1e-3
    relative (EUP reciprocal); the high-precision (f32) path uses exact division.
    """
    m = jnp.max(logits, axis=-1, keepdims=True)
    ex = jnp.exp(logits - m)                               # monotone in softmax probs
    n_exp = logits.shape[-1]
    lane = jax.lax.broadcasted_iota(jnp.int32, logits.shape, logits.ndim - 1)
    remaining = ex
    gate = jnp.zeros_like(ex)
    for _ in range(num_active):
        mx = jnp.max(remaining, axis=-1, keepdims=True)
        # lowest-index argmax via a lane min-reduce (cheaper than a cumsum lane-scan)
        idx = jnp.min(jnp.where(remaining == mx, lane, n_exp), axis=-1, keepdims=True)
        sel = lane == idx
        gate = jnp.where(sel, ex, gate)
        remaining = jnp.where(sel, -jnp.inf, remaining)
    denom = jnp.sum(gate, axis=-1, keepdims=True)
    if approx_recip:
        return gate * pl.reciprocal(denom, approx=True)    # EUP slot, off the VPU path
    return gate / denom


def _moe_fused_kernel(x_ref, wr_ref, br_ref, wall_ref, be_ref, out_ref, *,
                      num_active, num_experts, d_out, expert_chunk,
                      compute_dtype, router_dtype):
    xc = x_ref[...].astype(compute_dtype)
    if jnp.dtype(router_dtype) == jnp.dtype(compute_dtype):
        xr = xc
    else:
        xr = x_ref[...].astype(router_dtype)

    # ---- router + top-k gate (selection kept in f32 accumulation) ----
    logits = jnp.dot(xr, wr_ref[...], preferred_element_type=jnp.float32) + br_ref[...]
    gate = _topk_gate(logits, num_active,
                      approx_recip=(jnp.dtype(compute_dtype) != jnp.dtype(jnp.float32)))

    # ---- bias folded as a tiny f32 matmul: sum_e gate[:,e] * be[e] == gate @ be ----
    acc = jnp.dot(gate, be_ref[...], preferred_element_type=jnp.float32)     # (TN, Do)

    # ---- chunked expert matmuls with immediate gated accumulation ----
    # Each chunk keeps the MXU N-dim lane-dense when Do is small, without ever
    # materializing a (TN, E*Do) f32 intermediate.
    for c0 in range(0, num_experts, expert_chunk):
        c1 = min(c0 + expert_chunk, num_experts)
        y = jnp.dot(xc, wall_ref[:, c0 * d_out:c1 * d_out],
                    preferred_element_type=jnp.float32)                      # (TN, (c1-c0)*Do)
        for e in range(c0, c1):
            j = e - c0
            acc = acc + gate[:, e:e + 1] * y[:, j * d_out:(j + 1) * d_out]

    out_ref[...] = acc.astype(out_ref.dtype)


def _moe_streamed_kernel(x_ref, wr_ref, br_ref, we_ref, be_ref, out_ref,
                         xc_sc, gate_sc, acc_sc, *, num_active,
                         compute_dtype, router_dtype):
    e = pl.program_id(1)

    @pl.when(e == 0)
    def _():
        xc = x_ref[...].astype(compute_dtype)
        xc_sc[...] = xc                            # cache the cast once per token tile
        if jnp.dtype(router_dtype) == jnp.dtype(compute_dtype):
            xr = xc
        else:
            xr = x_ref[...].astype(router_dtype)
        logits = (jnp.dot(xr, wr_ref[...], preferred_element_type=jnp.float32)
                  + br_ref[...])
        g = _topk_gate(logits, num_active,
                       approx_recip=(jnp.dtype(compute_dtype) != jnp.dtype(jnp.float32)))
        gate_sc[...] = g
        # start the accumulator with the folded f32 bias term: gate @ be
        acc_sc[...] = jnp.dot(g, be_ref[...], preferred_element_type=jnp.float32)

    y_e = jnp.dot(xc_sc[...], we_ref[...], preferred_element_type=jnp.float32)  # (TN, Do)
    # pick gate column e with a lane-masked reduce (avoids a dynamic lane slice)
    lane = jax.lax.broadcasted_iota(jnp.int32, gate_sc.shape, 1)                # (TN, E)
    g_e = jnp.sum(jnp.where(lane == e, gate_sc[...], 0.0), axis=-1, keepdims=True)
    acc_sc[...] += g_e * y_e

    @pl.when(e == pl.num_programs(1) - 1)
    def _():
        out_ref[...] = acc_sc[...].astype(out_ref.dtype)


def moe_forward(x, wr, br, we, be, num_active, *,
                token_tile=None,
                compute_dtype=jnp.bfloat16,
                router_dtype=jnp.float32,
                stream_experts=None,
                resident_weight_budget_bytes=None,
                expert_chunk_lanes=512):
    """MoE forward. x:(N,D), wr:(D,E), br:(E,), we:(E,D,Do), be:(E,Do)."""
    n_tok, d_in = x.shape
    n_exp, d_in2, d_out = we.shape
    assert d_in2 == d_in
    # The reference accumulates into zeros_like(x) => output width must equal input width.
    assert d_out == d_in, "MoELayer reference requires output_dim == input_dim"
    assert 1 <= num_active <= n_exp, "need 1 <= num_active_experts <= num_experts"
    if n_tok == 0:
        return jnp.zeros((0, d_out), x.dtype)

    vmem_bytes, num_cores = _tpu_params()
    vmem_cap = int(vmem_bytes * 0.8)       # headroom for compiler-internal scratch

    wr2 = wr.astype(router_dtype)
    br2 = br.reshape(1, n_exp).astype(jnp.float32)
    be2 = be.reshape(n_exp, d_out).astype(jnp.float32)   # f32: bias gated at full precision

    if token_tile is None:
        token_tile = 512 if vmem_bytes <= (64 << 20) else 1024
    if resident_weight_budget_bytes is None:
        resident_weight_budget_bytes = vmem_bytes // 4   # chip-aware fused/streamed threshold

    slab_bytes = n_exp * d_in * d_out * _itemsize(compute_dtype)
    if stream_experts is None:
        stream_experts = slab_bytes > resident_weight_budget_bytes

    # --- token tile: as big as VMEM allows; keep >= 2 tiles when 2 TensorCores exist ---
    n_pad8 = _round_up(n_tok, 8)
    tile = min(_round_up(token_tile, 8), n_pad8)
    if num_cores >= 2 and n_pad8 >= 16:
        tile = min(tile, _round_up((n_pad8 + 1) // 2, 8))

    expert_chunk = max(1, min(n_exp, max(expert_chunk_lanes, 128) // max(d_out, 1)))
    chunk_lanes = expert_chunk * d_out

    def _estimate(t, const_bufs):
        if stream_experts:
            return _streamed_vmem_estimate(t, d_in, d_out, n_exp, x.dtype,
                                           compute_dtype, const_bufs)
        return _fused_vmem_estimate(t, d_in, d_out, n_exp, chunk_lanes, x.dtype,
                                    compute_dtype, const_bufs)

    while tile > 128 and _estimate(tile, 1) > vmem_cap:
        tile = max(128, _round_up(tile // 2, 8))

    n_pad = _round_up(n_tok, tile)
    x_p = x if n_pad == n_tok else jnp.pad(x, ((0, n_pad - n_tok), (0, 0)))
    grid_tokens = n_pad // tile

    def run(single_buffer):
        const_bufs = 1 if single_buffer else 2

        def cspec(shape, index_map):
            # constant-index operands: a second pipeline buffer is pure VMEM waste
            if single_buffer:
                return pl.BlockSpec(shape, index_map, pipeline_mode=pl.Buffered(1))
            return pl.BlockSpec(shape, index_map)

        resident = _estimate(tile, const_bufs)
        vmem_limit = int(min(vmem_cap, max(32 << 20, int(resident * 1.25) + (8 << 20))))

        if not stream_experts:
            # ---------------- fused path: resident (D, E*Do) expert weight slab ----------------
            wall = (jnp.transpose(we, (1, 0, 2))
                    .reshape(d_in, n_exp * d_out).astype(compute_dtype))
            kernel = functools.partial(
                _moe_fused_kernel, num_active=num_active, num_experts=n_exp,
                d_out=d_out, expert_chunk=expert_chunk,
                compute_dtype=compute_dtype, router_dtype=router_dtype)
            return pl.pallas_call(
                kernel,
                out_shape=jax.ShapeDtypeStruct((n_pad, d_out), x.dtype),
                grid_spec=pltpu.PrefetchScalarGridSpec(
                    num_scalar_prefetch=0,
                    grid=(grid_tokens,),
                    in_specs=[
                        pl.BlockSpec((tile, d_in), lambda i: (i, 0)),          # x tile
                        cspec((d_in, n_exp), lambda i: (0, 0)),                # router W
                        cspec((1, n_exp), lambda i: (0, 0)),                   # router b
                        cspec((d_in, n_exp * d_out), lambda i: (0, 0)),        # fused expert W
                        cspec((n_exp, d_out), lambda i: (0, 0)),               # expert biases
                    ],
                    out_specs=pl.BlockSpec((tile, d_out), lambda i: (i, 0)),
                ),
                compiler_params=pltpu.CompilerParams(
                    dimension_semantics=("parallel",),
                    vmem_limit_bytes=vmem_limit,
                ),
            )(x_p, wr2, br2, wall, be2)

        # ---------------- streamed path: one (D, Do) expert block per grid step ----------------
        we_c = we.astype(compute_dtype)
        kernel = functools.partial(
            _moe_streamed_kernel, num_active=num_active,
            compute_dtype=compute_dtype, router_dtype=router_dtype)
        return pl.pallas_call(
            kernel,
            out_shape=jax.ShapeDtypeStruct((n_pad, d_out), x.dtype),
            grid_spec=pltpu.PrefetchScalarGridSpec(
                num_scalar_prefetch=0,
                grid=(grid_tokens, n_exp),
                in_specs=[
                    pl.BlockSpec((tile, d_in), lambda i, e: (i, 0)),
                    cspec((d_in, n_exp), lambda i, e: (0, 0)),
                    cspec((1, n_exp), lambda i, e: (0, 0)),
                    pl.BlockSpec((None, d_in, d_out), lambda i, e: (e, 0, 0)),  # one expert W
                    cspec((n_exp, d_out), lambda i, e: (0, 0)),
                ],
                out_specs=pl.BlockSpec((tile, d_out), lambda i, e: (i, 0)),
                scratch_shapes=[
                    pltpu.VMEM((tile, d_in), compute_dtype),   # cached compute-dtype x
                    pltpu.VMEM((tile, n_exp), jnp.float32),    # gate (persists over e)
                    pltpu.VMEM((tile, d_out), jnp.float32),    # accumulator
                ],
            ),
            compiler_params=pltpu.CompilerParams(
                dimension_semantics=("parallel", "arbitrary"),
                vmem_limit_bytes=vmem_limit,
            ),
        )(x_p, wr2, br2, we_c, be2)

    try:
        out_p = run(True)
    except Exception:
        # pipeline_mode=pl.Buffered(1) unavailable on this JAX build: fall back to
        # default (double-buffered) specs with a correspondingly larger vmem limit.
        out_p = run(False)

    return out_p[:n_tok] if n_pad != n_tok else out_p


def moe_reference(x, wr, br, we, be, num_active):
    """Pure-JAX reference (f32) for correctness checking."""
    logits = x @ wr + br[None, :]
    probs = jax.nn.softmax(logits, axis=-1)
    topv, topi = jax.lax.top_k(probs, num_active)
    topv = topv / topv.sum(axis=-1, keepdims=True)
    gate = (jax.nn.one_hot(topi, probs.shape[-1], dtype=x.dtype)
            * topv[..., None]).sum(axis=1)                  # (N, E)
    expert_out = jnp.einsum("nd,edo->neo", x, we) + be[None, :, :]
    return jnp.einsum("ne,neo->no", gate, expert_out)


if __name__ == "__main__":
    # Small shapes consistent with the module (output_dim == input_dim).
    N_TOKENS = 48
    INPUT_DIM = 32
    OUTPUT_DIM = 32
    NUM_EXPERTS = 4
    NUM_ACTIVE = 2

    key = jax.random.PRNGKey(0)
    kx, kwr, kbr, kwe, kbe = jax.random.split(key, 5)

    x = jax.random.normal(kx, (N_TOKENS, INPUT_DIM), jnp.float32)
    # router Linear(input_dim, num_experts): stored as (in, out)
    wr = jax.random.normal(kwr, (INPUT_DIM, NUM_EXPERTS), jnp.float32) * 0.1
    br = jax.random.normal(kbr, (NUM_EXPERTS,), jnp.float32) * 0.1
    # experts Linear(input_dim, output_dim): stored as (E, in, out), biases (E, out)
    we = jax.random.normal(kwe, (NUM_EXPERTS, INPUT_DIM, OUTPUT_DIM), jnp.float32) * 0.1
    be = jax.random.normal(kbe, (NUM_EXPERTS, OUTPUT_DIM), jnp.float32) * 0.1

    ref = moe_reference(x, wr, br, we, be, NUM_ACTIVE)

    # fused path, f32 MXU inputs (tighter check)
    out_f32 = jax.block_until_ready(
        moe_forward(x, wr, br, we, be, NUM_ACTIVE,
                    compute_dtype=jnp.float32, stream_experts=False))
    assert out_f32.shape == (N_TOKENS, OUTPUT_DIM)
    assert jnp.allclose(out_f32, ref, atol=1e-3, rtol=1e-3), "fused f32 mismatch"

    # fused path, bf16 MXU inputs with f32 accumulation (recommended config)
    out_bf16 = jax.block_until_ready(
        moe_forward(x, wr, br, we, be, NUM_ACTIVE,
                    compute_dtype=jnp.bfloat16, stream_experts=False))
    assert jnp.allclose(out_bf16, ref, atol=3e-2, rtol=3e-2), "fused bf16 mismatch"

    # streamed path (what auto-select picks when the E*D*Do slab won't fit the VMEM budget)
    out_stream = jax.block_until_ready(
        moe_forward(x, wr, br, we, be, NUM_ACTIVE,
                    compute_dtype=jnp.bfloat16, stream_experts=True))
    assert jnp.allclose(out_stream, ref, atol=3e-2, rtol=3e-2), "streamed mismatch"

    print("KERNEL_OK")
</pallas_src>

<mosaic_0001>
module attributes {stable_mosaic.version = 11 : i64} {
  func.func @_moe_fused_kernel(%arg0: i32, %arg1: memref<48x32xf32, #tpu.memory_space<vmem>>, %arg2: memref<32x4xf32, #tpu.memory_space<vmem>>, %arg3: memref<1x4xf32, #tpu.memory_space<vmem>>, %arg4: memref<32x128xf32, #tpu.memory_space<vmem>>, %arg5: memref<4x32xf32, #tpu.memory_space<vmem>>, %arg6: memref<48x32xf32, #tpu.memory_space<vmem>>) attributes {dimension_semantics = [#tpu.dimension_semantics<parallel>], iteration_bounds = array<i64: 1>, scalar_prefetch = 0 : i64, scratch_operands = 0 : i64, tpu.core_type = #tpu.core_type<tc>, window_params = [{transform_indices = @transform_0, window_bounds = array<i64: 48, 32>}, {pipeline_mode = #tpu.pipeline_mode<synchronous>, transform_indices = @transform_1, window_bounds = array<i64: 32, 4>}, {pipeline_mode = #tpu.pipeline_mode<synchronous>, transform_indices = @transform_2, window_bounds = array<i64: 1, 4>}, {pipeline_mode = #tpu.pipeline_mode<synchronous>, transform_indices = @transform_3, window_bounds = array<i64: 32, 128>}, {pipeline_mode = #tpu.pipeline_mode<synchronous>, transform_indices = @transform_4, window_bounds = array<i64: 4, 32>}, {transform_indices = @transform_5, window_bounds = array<i64: 48, 32>}]} {
    %c0 = arith.constant 0 : index
    %c0_0 = arith.constant 0 : index
    %0 = vector.load %arg1[%c0, %c0_0] : memref<48x32xf32, #tpu.memory_space<vmem>>, vector<48x32xf32>
    %c0_1 = arith.constant 0 : index
    %c0_2 = arith.constant 0 : index
    %1 = vector.load %arg2[%c0_1, %c0_2] : memref<32x4xf32, #tpu.memory_space<vmem>>, vector<32x4xf32>
    %cst = arith.constant dense<0.000000e+00> : vector<48x4xf32>
    %2 = tpu.matmul %0, %1, %cst {dimension_numbers = #tpu.dot_dimension_numbers<[1], [0], [0], [1], [0, 0, 1, 1], [], []>} : vector<48x32xf32>, vector<32x4xf32>, vector<48x4xf32> -> vector<48x4xf32>
    %c0_3 = arith.constant 0 : index
    %c0_4 = arith.constant 0 : index
    %3 = vector.load %arg3[%c0_3, %c0_4] : memref<1x4xf32, #tpu.memory_space<vmem>>, vector<1x4xf32>
    %4 = vector.broadcast %3 : vector<1x4xf32> to vector<48x4xf32>
    %5 = arith.addf %2, %4 : vector<48x4xf32>
    %cst_5 = arith.constant dense<0xFF800000> : vector<48xf32>
    %6 = vector.multi_reduction <maximumf>, %5, %cst_5 [1] : vector<48x4xf32> to vector<48xf32>
    %7 = vector.shape_cast %6 : vector<48xf32> to vector<48x1xf32>
    %8 = vector.broadcast %7 : vector<48x1xf32> to vector<48x4xf32>
    %9 = arith.subf %5, %8 : vector<48x4xf32>
    %10 = math.exp %9 : vector<48x4xf32>
    %11 = tpu.iota {dimensions = array<i32: 1>} : vector<48x4xi32>
    %cst_6 = arith.constant 0.000000e+00 : f32
    %12 = vector.broadcast %cst_6 : f32 to vector<48x4xf32>
    %cst_7 = arith.constant dense<0xFF800000> : vector<48xf32>
    %13 = vector.multi_reduction <maximumf>, %10, %cst_7 [1] : vector<48x4xf32> to vector<48xf32>
    %14 = vector.shape_cast %13 : vector<48xf32> to vector<48x1xf32>
    %15 = vector.broadcast %14 : vector<48x1xf32> to vector<48x4xf32>
    %16 = arith.cmpf oeq, %10, %15 : vector<48x4xf32>
    %c4_i32 = arith.constant 4 : i32
    %17 = vector.broadcast %c4_i32 : i32 to vector<48x4xi32>
    %18 = arith.select %16, %11, %17 : vector<48x4xi1>, vector<48x4xi32>
    %cst_8 = arith.constant dense<2147483647> : vector<48xi32>
    %19 = vector.multi_reduction <minsi>, %18, %cst_8 [1] : vector<48x4xi32> to vector<48xi32>
    %20 = vector.shape_cast %19 : vector<48xi32> to vector<48x1xi32>
    %21 = vector.broadcast %20 : vector<48x1xi32> to vector<48x4xi32>
    %22 = arith.cmpi eq, %11, %21 : vector<48x4xi32>
    %23 = arith.select %22, %10, %12 : vector<48x4xi1>, vector<48x4xf32>
    %cst_9 = arith.constant 0xFF800000 : f32
    %24 = vector.broadcast %cst_9 : f32 to vector<48x4xf32>
    %25 = arith.select %22, %24, %10 : vector<48x4xi1>, vector<48x4xf32>
    %cst_10 = arith.constant dense<0xFF800000> : vector<48xf32>
    %26 = vector.multi_reduction <maximumf>, %25, %cst_10 [1] : vector<48x4xf32> to vector<48xf32>
    %27 = vector.shape_cast %26 : vector<48xf32> to vector<48x1xf32>
    %28 = vector.broadcast %27 : vector<48x1xf32> to vector<48x4xf32>
    %29 = arith.cmpf oeq, %25, %28 : vector<48x4xf32>
    %c4_i32_11 = arith.constant 4 : i32
    %30 = vector.broadcast %c4_i32_11 : i32 to vector<48x4xi32>
    %31 = arith.select %29, %11, %30 : vector<48x4xi1>, vector<48x4xi32>
    %cst_12 = arith.constant dense<2147483647> : vector<48xi32>
    %32 = vector.multi_reduction <minsi>, %31, %cst_12 [1] : vector<48x4xi32> to vector<48xi32>
    %33 = vector.shape_cast %32 : vector<48xi32> to vector<48x1xi32>
    %34 = vector.broadcast %33 : vector<48x1xi32> to vector<48x4xi32>
    %35 = arith.cmpi eq, %11, %34 : vector<48x4xi32>
    %36 = arith.select %35, %10, %23 : vector<48x4xi1>, vector<48x4xf32>
    %cst_13 = arith.constant dense<0.000000e+00> : vector<48xf32>
    %37 = vector.multi_reduction <add>, %36, %cst_13 [1] : vector<48x4xf32> to vector<48xf32>
    %38 = vector.shape_cast %37 : vector<48xf32> to vector<48x1xf32>
    %39 = vector.broadcast %38 : vector<48x1xf32> to vector<48x4xf32>
    %40 = arith.divf %36, %39 : vector<48x4xf32>
    %c0_14 = arith.constant 0 : index
    %c0_15 = arith.constant 0 : index
    %41 = vector.load %arg5[%c0_14, %c0_15] : memref<4x32xf32, #tpu.memory_space<vmem>>, vector<4x32xf32>
    %cst_16 = arith.constant dense<0.000000e+00> : vector<48x32xf32>
    %42 = tpu.matmul %40, %41, %cst_16 {dimension_numbers = #tpu.dot_dimension_numbers<[1], [0], [0], [1], [0, 0, 1, 1], [], []>} : vector<48x4xf32>, vector<4x32xf32>, vector<48x32xf32> -> vector<48x32xf32>
    %c0_17 = arith.constant 0 : index
    %c0_18 = arith.constant 0 : index
    %43 = vector.load %arg4[%c0_17, %c0_18] : memref<32x128xf32, #tpu.memory_space<vmem>>, vector<32x128xf32>
    %cst_19 = arith.constant dense<0.000000e+00> : vector<48x128xf32>
    %44 = tpu.matmul %0, %43, %cst_19 {dimension_numbers = #tpu.dot_dimension_numbers<[1], [0], [0], [1], [0, 0, 1, 1], [], []>} : vector<48x32xf32>, vector<32x128xf32>, vector<48x128xf32> -> vector<48x128xf32>
    %45 = vector.extract_strided_slice %40 {offsets = [0, 0], sizes = [48, 1], strides = [1, 1]} : vector<48x4xf32> to vector<48x1xf32>
    %46 = vector.extract_strided_slice %44 {offsets = [0, 0], sizes = [48, 32], strides = [1, 1]} : vector<48x128xf32> to vector<48x32xf32>
    %47 = vector.broadcast %45 : vector<48x1xf32> to vector<48x32xf32>
    %48 = arith.mulf %47, %46 : vector<48x32xf32>
    %49 = arith.addf %42, %48 : vector<48x32xf32>
    %50 = vector.extract_strided_slice %40 {offsets = [0, 1], sizes = [48, 1], strides = [1, 1]} : vector<48x4xf32> to vector<48x1xf32>
    %51 = vector.extract_strided_slice %44 {offsets = [0, 32], sizes = [48, 32], strides = [1, 1]} : vector<48x128xf32> to vector<48x32xf32>
    %52 = vector.broadcast %50 : vector<48x1xf32> to vector<48x32xf32>
    %53 = arith.mulf %52, %51 : vector<48x32xf32>
    %54 = arith.addf %49, %53 : vector<48x32xf32>
    %55 = vector.extract_strided_slice %40 {offsets = [0, 2], sizes = [48, 1], strides = [1, 1]} : vector<48x4xf32> to vector<48x1xf32>
    %56 = vector.extract_strided_slice %44 {offsets = [0, 64], sizes = [48, 32], strides = [1, 1]} : vector<48x128xf32> to vector<48x32xf32>
    %57 = vector.broadcast %55 : vector<48x1xf32> to vector<48x32xf32>
    %58 = arith.mulf %57, %56 : vector<48x32xf32>
    %59 = arith.addf %54, %58 : vector<48x32xf32>
    %60 = vector.extract_strided_slice %40 {offsets = [0, 3], sizes = [48, 1], strides = [1, 1]} : vector<48x4xf32> to vector<48x1xf32>
    %61 = vector.extract_strided_slice %44 {offsets = [0, 96], sizes = [48, 32], strides = [1, 1]} : vector<48x128xf32> to vector<48x32xf32>
    %62 = vector.broadcast %60 : vector<48x1xf32> to vector<48x32xf32>
    %63 = arith.mulf %62, %61 : vector<48x32xf32>
    %64 = arith.addf %59, %63 : vector<48x32xf32>
    %c0_20 = arith.constant 0 : index
    %c0_21 = arith.constant 0 : index
    %65 = vector.load %arg6[%c0_20, %c0_21] : memref<48x32xf32, #tpu.memory_space<vmem>>, vector<48x32xf32>
    tpu.vector_store %arg6[%c0_20, %c0_21], %64 {strides = array<i32>} : memref<48x32xf32, #tpu.memory_space<vmem>>, vector<48x32xf32>,
    return
  }
  func.func @transform_0(%arg0: i32) -> (i32, i32) {
    %c0_i32 = arith.constant 0 : i32
    %c0_i32_0 = arith.constant 0 : i32
    return %arg0, %c0_i32 : i32, i32
  }
  func.func @transform_1(%arg0: i32) -> (i32, i32) {
    %c0_i32 = arith.constant 0 : i32
    %c0_i32_0 = arith.constant 0 : i32
    %c0_i32_1 = arith.constant 0 : i32
    return %c0_i32, %c0_i32_0 : i32, i32
  }
  func.func @transform_2(%arg0: i32) -> (i32, i32) {
    %c0_i32 = arith.constant 0 : i32
    %c0_i32_0 = arith.constant 0 : i32
    %c0_i32_1 = arith.constant 0 : i32
    return %c0_i32, %c0_i32_0 : i32, i32
  }
  func.func @transform_3(%arg0: i32) -> (i32, i32) {
    %c0_i32 = arith.constant 0 : i32
    %c0_i32_0 = arith.constant 0 : i32
    %c0_i32_1 = arith.constant 0 : i32
    return %c0_i32, %c0_i32_0 : i32, i32
  }
  func.func @transform_4(%arg0: i32) -> (i32, i32) {
    %c0_i32 = arith.constant 0 : i32
    %c0_i32_0 = arith.constant 0 : i32
    %c0_i32_1 = arith.constant 0 : i32
    return %c0_i32, %c0_i32_0 : i32, i32
  }
  func.func @transform_5(%arg0: i32) -> (i32, i32) {
    %c0_i32 = arith.constant 0 : i32
    %c0_i32_0 = arith.constant 0 : i32
    return %arg0, %c0_i32 : i32, i32
  }
}

module attributes {stable_mosaic.version = 11 : i64} {
  func.func @_moe_fused_kernel(%arg0: i32, %arg1: memref<48x32xf32, #tpu.memory_space<vmem>>, %arg2: memref<32x4xf32, #tpu.memory_space<vmem>>, %arg3: memref<1x4xf32, #tpu.memory_space<vmem>>, %arg4: memref<32x128xf32, #tpu.memory_space<vmem>>, %arg5: memref<4x32xf32, #tpu.memory_space<vmem>>, %arg6: memref<48x32xf32, #tpu.memory_space<vmem>>) attributes {dimension_semantics = [#tpu.dimension_semantics<parallel>], iteration_bounds = array<i64: 1>, scalar_prefetch = 0 : i64, scratch_operands = 0 : i64, tpu.core_type = #tpu.core_type<tc>, window_params = [{transform_indices = @transform_0, window_bounds = array<i64: 48, 32>}, {pipeline_mode = #tpu.pipeline_mode<synchronous>, transform_indices = @transform_1, window_bounds = array<i64: 32, 4>}, {pipeline_mode = #tpu.pipeline_mode<synchronous>, transform_indices = @transform_2, window_bounds = array<i64: 1, 4>}, {pipeline_mode = #tpu.pipeline_mode<synchronous>, transform_indices = @transform_3, window_bounds = array<i64: 32, 128>}, {pipeline_mode = #tpu.pipeline_mode<synchronous>, transform_indices = @transform_4, window_bounds = array<i64: 4, 32>}, {transform_indices = @transform_5, window_bounds = array<i64: 48, 32>}]} {
    %c0 = arith.constant 0 : index
    %c0_0 = arith.constant 0 : index
    %0 = vector.load %arg1[%c0, %c0_0] : memref<48x32xf32, #tpu.memory_space<vmem>>, vector<48x32xf32>
    %c0_1 = arith.constant 0 : index
    %c0_2 = arith.constant 0 : index
    %1 = vector.load %arg2[%c0_1, %c0_2] : memref<32x4xf32, #tpu.memory_space<vmem>>, vector<32x4xf32>
    %cst = arith.constant dense<0.000000e+00> : vector<48x4xf32>
    %2 = tpu.matmul %0, %1, %cst {dimension_numbers = #tpu.dot_dimension_numbers<[1], [0], [0], [1], [0, 0, 1, 1], [], []>} : vector<48x32xf32>, vector<32x4xf32>, vector<48x4xf32> -> vector<48x4xf32>
    %c0_3 = arith.constant 0 : index
    %c0_4 = arith.constant 0 : index
    %3 = vector.load %arg3[%c0_3, %c0_4] : memref<1x4xf32, #tpu.memory_space<vmem>>, vector<1x4xf32>
    %4 = vector.broadcast %3 : vector<1x4xf32> to vector<48x4xf32>
    %5 = arith.addf %2, %4 : vector<48x4xf32>
    %cst_5 = arith.constant dense<0xFF800000> : vector<48xf32>
    %6 = vector.multi_reduction <maximumf>, %5, %cst_5 [1] : vector<48x4xf32> to vector<48xf32>
    %7 = vector.shape_cast %6 : vector<48xf32> to vector<48x1xf32>
    %8 = vector.broadcast %7 : vector<48x1xf32> to vector<48x4xf32>
    %9 = arith.subf %5, %8 : vector<48x4xf32>
    %10 = math.exp %9 : vector<48x4xf32>
    %11 = tpu.iota {dimensions = array<i32: 1>} : vector<48x4xi32>
    %cst_6 = arith.constant 0.000000e+00 : f32
    %12 = vector.broadcast %cst_6 : f32 to vector<48x4xf32>
    %cst_7 = arith.constant dense<0xFF800000> : vector<48xf32>
    %13 = vector.multi_reduction <maximumf>, %10, %cst_7 [1] : vector<48x4xf32> to vector<48xf32>
    %14 = vector.shape_cast %13 : vector<48xf32> to vector<48x1xf32>
    %15 = vector.broadcast %14 : vector<48x1xf32> to vector<48x4xf32>
    %16 = arith.cmpf oeq, %10, %15 : vector<48x4xf32>
    %c4_i32 = arith.constant 4 : i32
    %17 = vector.broadcast %c4_i32 : i32 to vector<48x4xi32>
    %18 = arith.select %16, %11, %17 : vector<48x4xi1>, vector<48x4xi32>
    %cst_8 = arith.constant dense<2147483647> : vector<48xi32>
    %19 = vector.multi_reduction <minsi>, %18, %cst_8 [1] : vector<48x4xi32> to vector<48xi32>
    %20 = vector.shape_cast %19 : vector<48xi32> to vector<48x1xi32>
    %21 = vector.broadcast %20 : vector<48x1xi32> to vector<48x4xi32>
    %22 = arith.cmpi eq, %11, %21 : vector<48x4xi32>
    %23 = arith.select %22, %10, %12 : vector<48x4xi1>, vector<48x4xf32>
    %cst_9 = arith.constant 0xFF800000 : f32
    %24 = vector.broadcast %cst_9 : f32 to vector<48x4xf32>
    %25 = arith.select %22, %24, %10 : vector<48x4xi1>, vector<48x4xf32>
    %cst_10 = arith.constant dense<0xFF800000> : vector<48xf32>
    %26 = vector.multi_reduction <maximumf>, %25, %cst_10 [1] : vector<48x4xf32> to vector<48xf32>
    %27 = vector.shape_cast %26 : vector<48xf32> to vector<48x1xf32>
    %28 = vector.broadcast %27 : vector<48x1xf32> to vector<48x4xf32>
    %29 = arith.cmpf oeq, %25, %28 : vector<48x4xf32>
    %c4_i32_11 = arith.constant 4 : i32
    %30 = vector.broadcast %c4_i32_11 : i32 to vector<48x4xi32>
    %31 = arith.select %29, %11, %30 : vector<48x4xi1>, vector<48x4xi32>
    %cst_12 = arith.constant dense<2147483647> : vector<48xi32>
    %32 = vector.multi_reduction <minsi>, %31, %cst_12 [1] : vector<48x4xi32> to vector<48xi32>
    %33 = vector.shape_cast %32 : vector<48xi32> to vector<48x1xi32>
    %34 = vector.broadcast %33 : vector<48x1xi32> to vector<48x4xi32>
    %35 = arith.cmpi eq, %11, %34 : vector<48x4xi32>
    %36 = arith.select %35, %10, %23 : vector<48x4xi1>, vector<48x4xf32>
    %cst_13 = arith.constant dense<0.000000e+00> : vector<48xf32>
    %37 = vector.multi_reduction <add>, %36, %cst_13 [1] : vector<48x4xf32> to vector<48xf32>
    %38 = vector.shape_cast %37 : vector<48xf32> to vector<48x1xf32>
    %39 = vector.broadcast %38 : vector<48x1xf32> to vector<48x4xf32>
    %40 = arith.divf %36, %39 : vector<48x4xf32>
    %c0_14 = arith.constant 0 : index
    %c0_15 = arith.constant 0 : index
    %41 = vector.load %arg5[%c0_14, %c0_15] : memref<4x32xf32, #tpu.memory_space<vmem>>, vector<4x32xf32>
    %cst_16 = arith.constant dense<0.000000e+00> : vector<48x32xf32>
    %42 = tpu.matmul %40, %41, %cst_16 {dimension_numbers = #tpu.dot_dimension_numbers<[1], [0], [0], [1], [0, 0, 1, 1], [], []>} : vector<48x4xf32>, vector<4x32xf32>, vector<48x32xf32> -> vector<48x32xf32>
    %c0_17 = arith.constant 0 : index
    %c0_18 = arith.constant 0 : index
    %43 = vector.load %arg4[%c0_17, %c0_18] : memref<32x128xf32, #tpu.memory_space<vmem>>, vector<32x128xf32>
    %cst_19 = arith.constant dense<0.000000e+00> : vector<48x128xf32>
    %44 = tpu.matmul %0, %43, %cst_19 {dimension_numbers = #tpu.dot_dimension_numbers<[1], [0], [0], [1], [0, 0, 1, 1], [], []>} : vector<48x32xf32>, vector<32x128xf32>, vector<48x128xf32> -> vector<48x128xf32>
    %45 = vector.extract_strided_slice %40 {offsets = [0, 0], sizes = [48, 1], strides = [1, 1]} : vector<48x4xf32> to vector<48x1xf32>
    %46 = vector.extract_strided_slice %44 {offsets = [0, 0], sizes = [48, 32], strides = [1, 1]} : vector<48x128xf32> to vector<48x32xf32>
    %47 = vector.broadcast %45 : vector<48x1xf32> to vector<48x32xf32>
    %48 = arith.mulf %47, %46 : vector<48x32xf32>
    %49 = arith.addf %42, %48 : vector<48x32xf32>
    %50 = vector.extract_strided_slice %40 {offsets = [0, 1], sizes = [48, 1], strides = [1, 1]} : vector<48x4xf32> to vector<48x1xf32>
    %51 = vector.extract_strided_slice %44 {offsets = [0, 32], sizes = [48, 32], strides = [1, 1]} : vector<48x128xf32> to vector<48x32xf32>
    %52 = vector.broadcast %50 : vector<48x1xf32> to vector<48x32xf32>
    %53 = arith.mulf %52, %51 : vector<48x32xf32>
    %54 = arith.addf %49, %53 : vector<48x32xf32>
    %55 = vector.extract_strided_slice %40 {offsets = [0, 2], sizes = [48, 1], strides = [1, 1]} : vector<48x4xf32> to vector<48x1xf32>
    %56 = vector.extract_strided_slice %44 {offsets = [0, 64], sizes = [48, 32], strides = [1, 1]} : vector<48x128xf32> to vector<48x32xf32>
    %57 = vector.broadcast %55 : vector<48x1xf32> to vector<48x32xf32>
    %58 = arith.mulf %57, %56 : vector<48x32xf32>
    %59 = arith.addf %54, %58 : vector<48x32xf32>
    %60 = vector.extract_strided_slice %40 {offsets = [0, 3], sizes = [48, 1], strides = [1, 1]} : vector<48x4xf32> to vector<48x1xf32>
    %61 = vector.extract_strided_slice %44 {offsets = [0, 96], sizes = [48, 32], strides = [1, 1]} : vector<48x128xf32> to vector<48x32xf32>
    %62 = vector.broadcast %60 : vector<48x1xf32> to vector<48x32xf32>
    %63 = arith.mulf %62, %61 : vector<48x32xf32>
    %64 = arith.addf %59, %63 : vector<48x32xf32>
    %c0_20 = arith.constant 0 : index
    %c0_21 = arith.constant 0 : index
    %65 = vector.load %arg6[%c0_20, %c0_21] : memref<48x32xf32, #tpu.memory_space<vmem>>, vector<48x32xf32>
    tpu.vector_store %arg6[%c0_20, %c0_21], %64 {strides = array<i32>} : memref<48x32xf32, #tpu.memory_space<vmem>>, vector<48x32xf32>,
    return
  }
  func.func @transform_0(%arg0: i32) -> (i32, i32) {
    %c0_i32 = arith.constant 0 : i32
    %c0_i32_0 = arith.constant 0 : i32
    return %arg0, %c0_i32 : i32, i32
  }
  func.func @transform_1(%arg0: i32) -> (i32, i32) {
    %c0_i32 = arith.constant 0 : i32
    %c0_i32_0 = arith.constant 0 : i32
    %c0_i32_1 = arith.constant 0 : i32
    return %c0_i32, %c0_i32_0 : i32, i32
  }
  func.func @transform_2(%arg0: i32) -> (i32, i32) {
    %c0_i32 = arith.constant 0 : i32
    %c0_i32_0 = arith.constant 0 : i32
    %c0_i32_1 = arith.constant 0 : i32
    return %c0_i32, %c0_i32_0 : i32, i32
  }
  func.func @transform_3(%arg0: i32) -> (i32, i32) {
    %c0_i32 = arith.constant 0 : i32
    %c0_i32_0 = arith.constant 0 : i32
    %c0_i32_1 = arith.constant 0 : i32
    return %c0_i32, %c0_i32_0 : i32, i32
  }
  func.func @transform_4(%arg0: i32) -> (i32, i32) {
    %c0_i32 = arith.constant 0 : i32
    %c0_i32_0 = arith.constant 0 : i32
    %c0_i32_1 = arith.constant 0 : i32
    return %c0_i32, %c0_i32_0 : i32, i32
  }
  func.func @transform_5(%arg0: i32) -> (i32, i32) {
    %c0_i32 = arith.constant 0 : i32
    %c0_i32_0 = arith.constant 0 : i32
    return %arg0, %c0_i32 : i32, i32
  }
}

</mosaic_0001>

<llo_original>
// kernel: tpu_custom_call.1
$region0: #{tpu_custom_call.1}
  #allocation0 [shape = 'u32[]', space=smem, size = 0x4, offset = 0x4, fixed_abs, tag = 'smem constant byte address 0x4 - core index']
  #allocation1 [shape = 'u32[144,128]{1,0:T(1,128)}', space=vmem, size = 0x12000, scoped, tag = 'internal scratch']
  %s0 = inlined_call_operand.vmem [shape: f32[48,32], index: 0, kind: input, shape index: {}]
  %s1 = inlined_call_operand.vmem [shape: f32[32,4], index: 1, kind: input, shape index: {}]
  %s2 = inlined_call_operand.vmem [shape: f32[1,4], index: 2, kind: input, shape index: {}]
  %s3 = inlined_call_operand.vmem [shape: f32[32,128], index: 3, kind: input, shape index: {}]
  %s4 = inlined_call_operand.vmem [shape: f32[4,32], index: 4, kind: input, shape index: {}]
  %s5 = inlined_call_operand.vmem [shape: f32[48,32], index: 5, kind: output, shape index: {}]
  %s6 = sld [smem:[#allocation0]]
  $region30: #{tpu_custom_call.1} parent=0
    _
  %s8 = ssub.s32 1, %s6
  %s9 = scalar_select 0, %s8, %s6
  // Predicated region
  $region2: #{tpu_custom_call.1} parent=0 // pred_check
    _
  $region3: #{tpu_custom_call.1} parent=0 // pred_check_branch
    %11 = sbr.rel (0) target = $region5
  $region4: #{tpu_custom_call.1} parent=0 // pred_region
    _
  $region5: #{tpu_custom_call.1} parent=0 // pred_fallthru
    _
  // Predicated region
  $region6: #{tpu_custom_call.1} parent=0 // pred_check
    _
  $region7: #{tpu_custom_call.1} parent=0 // pred_check_branch
    %13 = sbr.rel (0) target = $region9
  $region8: #{tpu_custom_call.1} parent=0 // pred_region
    _
  $region9: #{tpu_custom_call.1} parent=0 // pred_fallthru
    _
  // Predicated region
  $region10: #{tpu_custom_call.1} parent=0 // pred_check
    _
  $region11: #{tpu_custom_call.1} parent=0 // pred_check_branch
    %15 = sbr.rel (0) target = $region13
  $region12: #{tpu_custom_call.1} parent=0 // pred_region
    _
  $region13: #{tpu_custom_call.1} parent=0 // pred_fallthru
    _
  // Predicated region
  $region14: #{tpu_custom_call.1} parent=0 // pred_check
    _
  $region15: #{tpu_custom_call.1} parent=0 // pred_check_branch
    %17 = sbr.rel (0) target = $region17
  $region16: #{tpu_custom_call.1} parent=0 // pred_region
    _
  $region17: #{tpu_custom_call.1} parent=0 // pred_fallthru
    _
  // Predicated region
  $region18: #{tpu_custom_call.1} parent=0 // pred_check
    _
  $region19: #{tpu_custom_call.1} parent=0 // pred_check_branch
    %19 = sbr.rel (0) target = $region21
  $region20: #{tpu_custom_call.1} parent=0 // pred_region
    _
  $region21: #{tpu_custom_call.1} parent=0 // pred_fallthru
    _
  %v20 = vld [vmem:[%s0] sm:$0xff]
  %v21 = vld [vmem:[%s0 + $0x8] sm:$0xff]
  %v22 = vld [vmem:[%s0 + $0x10] sm:$0xff]
  %v23 = vld [vmem:[%s0 + $0x18] sm:$0xff]
  %v24 = vld [vmem:[%s0 + $0x20] sm:$0xff]
  %v25 = vld [vmem:[%s0 + $0x28] sm:$0xff]
  %v26 = vld [vmem:[%s1] sm:$0xff]
  %v27 = vld [vmem:[%s1 + $0x8] sm:$0xff]
  %v28 = vld [vmem:[%s1 + $0x10] sm:$0xff]
  %v29 = vld [vmem:[%s1 + $0x18] sm:$0xff]
  %v30 = vld [vmem:[%s2] sm:$0x1]
  %v32 = vlaneseq
  %v33 = vshrl.u32 %v32, 7
  %v34 = vsub.s32 0, %v33
  %v35 = vrot.slane %v30, %v34
  %vm37 = vcmask 261120
  %v39 = vsel %vm37, %v20, 0
  %v42 = vsel %vm37, %v21, 0
  %v45 = vsel %vm37, %v22, 0
  %v48 = vsel %vm37, %v23, 0
  %v51 = vsel %vm37, %v24, 0
  %v54 = vsel %vm37, %v25, 0
  %56 = vmatprep.subr.mxu0 0.0
  %57 = vmatpush1.msra.mxu0 0.0
  %58 = vmatprep.subr.mxu0 0.0
  %59 = vmatpush1.msra.mxu0 0.0
  %60 = vmatprep.subr.mxu0 0.0
  %61 = vmatpush1.msra.mxu0 0.0
  %62 = vmatprep.subr.mxu0 0.0
  %63 = vmatpush1.msra.mxu0 0.0
  %64 = vmatprep.subr.mxu0 0.0
  %65 = vmatpush1.msra.mxu0 0.0
  %66 = vmatprep.subr.mxu0 0.0
  %67 = vmatpush1.msra.mxu0 0.0
  %68 = vmatprep.subr.mxu0 0.0
  %69 = vmatpush1.msra.mxu0 0.0
  %70 = vmatprep.subr.mxu0 0.0
  %71 = vmatpush1.msra.mxu0 0.0
  %72 = vmatprep.subr.mxu0 0.0
  %73 = vmatpush1.msra.mxu0 0.0
  %74 = vmatprep.subr.mxu0 0.0
  %75 = vmatpush1.msra.mxu0 0.0
  %76 = vmatprep.subr.mxu0 0.0
  %77 = vmatpush1.msra.mxu0 0.0
  %78 = vmatprep.subr.mxu0 0.0
  %79 = vmatpush1.msra.mxu0 0.0
  %80 = vmatprep.subr.mxu0 0.0
  %81 = vmatpush1.msra.mxu0 %v29
  %82 = vmatprep.subr.mxu0 0.0
  %83 = vmatpush1.msra.mxu0 %v28
  %84 = vmatprep.subr.mxu0 0.0
  %85 = vmatpush1.msra.mxu0 %v27
  %86 = vmatprep.subr.mxu0 0.0
  %87 = vmatpush1.msra.mxu0 %v26
  %88 = vmatprep.subr.mxu0 0.0
  %89 = vmatpush2.msra.mxu0 0.0
  %90 = vmatprep.subr.mxu0 0.0
  %91 = vmatpush2.msra.mxu0 0.0
  %92 = vmatprep.subr.mxu0 0.0
  %93 = vmatpush2.msra.mxu0 0.0
  %94 = vmatprep.subr.mxu0 0.0
  %95 = vmatpush2.msra.mxu0 0.0
  %96 = vmatprep.subr.mxu0 0.0
  %97 = vmatpush2.msra.mxu0 0.0
  %98 = vmatprep.subr.mxu0 0.0
  %99 = vmatpush2.msra.mxu0 0.0
  %100 = vmatprep.subr.mxu0 0.0
  %101 = vmatpush2.msra.mxu0 0.0
  %102 = vmatprep.subr.mxu0 0.0
  %103 = vmatpush2.msra.mxu0 0.0
  %104 = vmatprep.subr.mxu0 0.0
  %105 = vmatpush2.msra.mxu0 0.0
  %106 = vmatprep.subr.mxu0 0.0
  %107 = vmatpush2.msra.mxu0 0.0
  %108 = vmatprep.subr.mxu0 0.0
  %109 = vmatpush2.msra.mxu0 0.0
  %110 = vmatprep.subr.mxu0 0.0
  %111 = vmatpush2.msra.mxu0 0.0
  %112 = vmatprep.subr.mxu0 0.0
  %113 = vmatpush2.msra.mxu0 0.0
  %114 = vmatprep.subr.mxu0 0.0
  %115 = vmatpush2.msra.mxu0 0.0
  %116 = vmatprep.subr.mxu0 0.0
  %117 = vmatpush2.msra.mxu0 0.0
  %118 = vmatprep.subr.mxu0 0.0
  %119 = vmatpush2.msra.mxu0 0.0
  %120 = vmatprep.mubr.f32.mxu0 0.0
  %121 = vmatmul.mubr.f32.gmra.mxu0 %v39
  %v122 = vpop.f32.mrf.mxu0
  %v123 = vadd.f32 %v35, %v122
  %v124 = vpop.f32.mrf.mxu0
  %125 = vmatprep.mubr.f32.mxu0 0.0
  %126 = vmatmul.mubr.f32.gmra.mxu0 %v42
  %v127 = vpop.f32.mrf.mxu0
  %v128 = vadd.f32 %v35, %v127
  %v129 = vpop.f32.mrf.mxu0
  %130 = vmatprep.mubr.f32.mxu0 0.0
  %131 = vmatmul.mubr.f32.gmra.mxu0 %v45
  %v132 = vpop.f32.mrf.mxu0
  %v133 = vadd.f32 %v35, %v132
  %v134 = vpop.f32.mrf.mxu0
  %135 = vmatprep.mubr.f32.mxu0 0.0
  %136 = vmatmul.mubr.f32.gmra.mxu0 %v48
  %v137 = vpop.f32.mrf.mxu0
  %v138 = vadd.f32 %v35, %v137
  %v139 = vpop.f32.mrf.mxu0
  %140 = vmatprep.mubr.f32.mxu0 0.0
  %141 = vmatmul.mubr.f32.gmra.mxu0 %v51
  %v142 = vpop.f32.mrf.mxu0
  %v143 = vadd.f32 %v35, %v142
  %v144 = vpop.f32.mrf.mxu0
  %145 = vmatprep.mubr.f32.mxu0 0.0
  %146 = vmatmul.mubr.f32.gmra.mxu0 %v54
  %v147 = vpop.f32.mrf.mxu0
  %v148 = vadd.f32 %v35, %v147
  %v149 = vpop.f32.mrf.mxu0
  %150 = vdwg.mxu0
  %vm151 = vcmask 31744
  %v152 = vsel %vm151, %v123, -inf
  %153 = vmax.xlane.f32.xlu0 %v152
  %v154 = vpop.xlane.xlu0 %153
  %v155 = vsel %vm151, %v128, -inf
  %156 = vmax.xlane.f32.xlu0 %v155
  %v157 = vpop.xlane.xlu0 %156
  %v158 = vsel %vm151, %v133, -inf
  %159 = vmax.xlane.f32.xlu0 %v158
  %v160 = vpop.xlane.xlu0 %159
  %v161 = vsel %vm151, %v138, -inf
  %162 = vmax.xlane.f32.xlu0 %v161
  %v163 = vpop.xlane.xlu0 %162
  %v164 = vsel %vm151, %v143, -inf
  %165 = vmax.xlane.f32.xlu0 %v164
  %v166 = vpop.xlane.xlu0 %165
  %v167 = vsel %vm151, %v148, -inf
  %168 = vmax.xlane.f32.xlu0 %v167
  %v169 = vpop.xlane.xlu0 %168
  %v170 = vsub.f32 %v123, %v154
  %v171 = vsub.f32 %v128, %v157
  %v172 = vsub.f32 %v133, %v160
  %v173 = vsub.f32 %v138, %v163
  %v174 = vsub.f32 %v143, %v166
  %v175 = vsub.f32 %v148, %v169
  %v176 = vmul.f32 %v170, 1.442695
  %v177 = vpow.pop %v176
  %v178 = vmul.f32 %v171, 1.442695
  %v179 = vpow.pop %v178
  %v180 = vmul.f32 %v172, 1.442695
  %v181 = vpow.pop %v180
  %v182 = vmul.f32 %v173, 1.442695
  %v183 = vpow.pop %v182
  %v184 = vmul.f32 %v174, 1.442695
  %v185 = vpow.pop %v184
  %v186 = vmul.f32 %v175, 1.442695
  %v187 = vpow.pop %v186
  %v188 = vlaneseq
  %v189 = vand.u32 %v188, 127
  %v190 = vsel %vm151, %v177, -inf
  %191 = vmax.xlane.f32.xlu0 %v190
  %v192 = vpop.xlane.xlu0 %191
  %v193 = vsel %vm151, %v179, -inf
  %194 = vmax.xlane.f32.xlu0 %v193
  %v195 = vpop.xlane.xlu0 %194
  %v196 = vsel %vm151, %v181, -inf
  %197 = vmax.xlane.f32.xlu0 %v196
  %v198 = vpop.xlane.xlu0 %197
  %v199 = vsel %vm151, %v183, -inf
  %200 = vmax.xlane.f32.xlu0 %v199
  %v201 = vpop.xlane.xlu0 %200
  %v202 = vsel %vm151, %v185, -inf
  %203 = vmax.xlane.f32.xlu0 %v202
  %v204 = vpop.xlane.xlu0 %203
  %v205 = vsel %vm151, %v187, -inf
  %206 = vmax.xlane.f32.xlu0 %v205
  %v207 = vpop.xlane.xlu0 %206
  %vm208 = vcmp.eq.f32.partialorder %v177, %v192
  %vm209 = vcmp.eq.f32.partialorder %v179, %v195
  %vm210 = vcmp.eq.f32.partialorder %v181, %v198
  %vm211 = vcmp.eq.f32.partialorder %v183, %v201
  %vm212 = vcmp.eq.f32.partialorder %v185, %v204
  %vm213 = vcmp.eq.f32.partialorder %v187, %v207
  %v214 = vsel %vm208, %v189, 4
  %v215 = vsel %vm209, %v189, 4
  %v216 = vsel %vm210, %v189, 4
  %v217 = vsel %vm211, %v189, 4
  %v218 = vsel %vm212, %v189, 4
  %v219 = vsel %vm213, %v189, 4
  %v220 = vsel %vm151, %v214, 2147483647
  %v221 = vand.u32 %v220, 65535
  %v222 = vshra.s32 %v220, 16
  %v223 = vcvt.s32.f32 %v221
  %v224 = vcvt.s32.f32 %v222
  %225 = vmin.xlane.f32.xlu0 %v224
  %v226 = vpop.xlane.xlu0 %225
  %vm227 = vcmp.eq.f32.partialorder %v224, %v226
  %v228 = vsel %vm227, %v223, inf
  %229 = vmin.xlane.f32.xlu0 %v228
  %v230 = vpop.xlane.xlu0 %229
  %v231 = vcvt.f32.s32 %v230
  %v232 = vcvt.f32.s32 %v226
  %v233 = vshll.u32 %v232, 16
  %v234 = vadd.s32 %v233, %v231
  %v235 = vsel %vm151, %v215, 2147483647
  %v236 = vand.u32 %v235, 65535
  %v237 = vshra.s32 %v235, 16
  %v238 = vcvt.s32.f32 %v236
  %v239 = vcvt.s32.f32 %v237
  %240 = vmin.xlane.f32.xlu0 %v239
  %v241 = vpop.xlane.xlu0 %240
  %vm242 = vcmp.eq.f32.partialorder %v239, %v241
  %v243 = vsel %vm242, %v238, inf
  %244 = vmin.xlane.f32.xlu0 %v243
  %v245 = vpop.xlane.xlu0 %244
  %v246 = vcvt.f32.s32 %v245
  %v247 = vcvt.f32.s32 %v241
  %v248 = vshll.u32 %v247, 16
  %v249 = vadd.s32 %v248, %v246
  %v250 = vsel %vm151, %v216, 2147483647
  %v251 = vand.u32 %v250, 65535
  %v252 = vshra.s32 %v250, 16
  %v253 = vcvt.s32.f32 %v251
  %v254 = vcvt.s32.f32 %v252
  %255 = vmin.xlane.f32.xlu0 %v254
  %v256 = vpop.xlane.xlu0 %255
  %vm257 = vcmp.eq.f32.partialorder %v254, %v256
  %v258 = vsel %vm257, %v253, inf
  %259 = vmin.xlane.f32.xlu0 %v258
  %v260 = vpop.xlane.xlu0 %259
  %v261 = vcvt.f32.s32 %v260
  %v262 = vcvt.f32.s32 %v256
  %v263 = vshll.u32 %v262, 16
  %v264 = vadd.s32 %v263, %v261
  %v265 = vsel %vm151, %v217, 2147483647
  %v266 = vand.u32 %v265, 65535
  %v267 = vshra.s32 %v265, 16
  %v268 = vcvt.s32.f32 %v266
  %v269 = vcvt.s32.f32 %v267
  %270 = vmin.xlane.f32.xlu0 %v269
  %v271 = vpop.xlane.xlu0 %270
  %vm272 = vcmp.eq.f32.partialorder %v269, %v271
  %v273 = vsel %vm272, %v268, inf
  %274 = vmin.xlane.f32.xlu0 %v273
  %v275 = vpop.xlane.xlu0 %274
  %v276 = vcvt.f32.s32 %v275
  %v277 = vcvt.f32.s32 %v271
  %v278 = vshll.u32 %v277, 16
  %v279 = vadd.s32 %v278, %v276
  %v280 = vsel %vm151, %v218, 2147483647
  %v281 = vand.u32 %v280, 65535
  %v282 = vshra.s32 %v280, 16
  %v283 = vcvt.s32.f32 %v281
  %v284 = vcvt.s32.f32 %v282
  %285 = vmin.xlane.f32.xlu0 %v284
  %v286 = vpop.xlane.xlu0 %285
  %vm287 = vcmp.eq.f32.partialorder %v284, %v286
  %v288 = vsel %vm287, %v283, inf
  %289 = vmin.xlane.f32.xlu0 %v288
  %v290 = vpop.xlane.xlu0 %289
  %v291 = vcvt.f32.s32 %v290
  %v292 = vcvt.f32.s32 %v286
  %v293 = vshll.u32 %v292, 16
  %v294 = vadd.s32 %v293, %v291
  %v295 = vsel %vm151, %v219, 2147483647
  %v296 = vand.u32 %v295, 65535
  %v297 = vshra.s32 %v295, 16
  %v298 = vcvt.s32.f32 %v296
  %v299 = vcvt.s32.f32 %v297
  %300 = vmin.xlane.f32.xlu0 %v299
  %v301 = vpop.xlane.xlu0 %300
  %vm302 = vcmp.eq.f32.partialorder %v299, %v301
  %v303 = vsel %vm302, %v298, inf
  %304 = vmin.xlane.f32.xlu0 %v303
  %v305 = vpop.xlane.xlu0 %304
  %v306 = vcvt.f32.s32 %v305
  %v307 = vcvt.f32.s32 %v301
  %v308 = vshll.u32 %v307, 16
  %v309 = vadd.s32 %v308, %v306
  %vm310 = vcmp.eq.s32.totalorder %v189, %v234
  %vm311 = vcmp.eq.s32.totalorder %v189, %v249
  %vm312 = vcmp.eq.s32.totalorder %v189, %v264
  %vm313 = vcmp.eq.s32.totalorder %v189, %v279
  %vm314 = vcmp.eq.s32.totalorder %v189, %v294
  %vm315 = vcmp.eq.s32.totalorder %v189, %v309
  %v316 = vsel %vm310, %v177, 0.0
  %v317 = vsel %vm311, %v179, 0.0
  %v318 = vsel %vm312, %v181, 0.0
  %v319 = vsel %vm313, %v183, 0.0
  %v320 = vsel %vm314, %v185, 0.0
  %v321 = vsel %vm315, %v187, 0.0
  %v322 = vsel %vm310, -inf, %v177
  %v323 = vsel %vm311, -inf, %v179
  %v324 = vsel %vm312, -inf, %v181
  %v325 = vsel %vm313, -inf, %v183
  %v326 = vsel %vm314, -inf, %v185
  %v327 = vsel %vm315, -inf, %v187
  %v328 = vsel %vm151, %v322, -inf
  %329 = vmax.xlane.f32.xlu0 %v328
  %v330 = vpop.xlane.xlu0 %329
  %v331 = vsel %vm151, %v323, -inf
  %332 = vmax.xlane.f32.xlu0 %v331
  %v333 = vpop.xlane.xlu0 %332
  %v334 = vsel %vm151, %v324, -inf
  %335 = vmax.xlane.f32.xlu0 %v334
  %v336 = vpop.xlane.xlu0 %335
  %v337 = vsel %vm151, %v325, -inf
  %338 = vmax.xlane.f32.xlu0 %v337
  %v339 = vpop.xlane.xlu0 %338
  %v340 = vsel %vm151, %v326, -inf
  %341 = vmax.xlane.f32.xlu0 %v340
  %v342 = vpop.xlane.xlu0 %341
  %v343 = vsel %vm151, %v327, -inf
  %344 = vmax.xlane.f32.xlu0 %v343
  %v345 = vpop.xlane.xlu0 %344
  %vm346 = vcmp.eq.f32.partialorder %v322, %v330
  %vm347 = vcmp.eq.f32.partialorder %v323, %v333
  %vm348 = vcmp.eq.f32.partialorder %v324, %v336
  %vm349 = vcmp.eq.f32.partialorder %v325, %v339
  %vm350 = vcmp.eq.f32.partialorder %v326, %v342
  %vm351 = vcmp.eq.f32.partialorder %v327, %v345
  %v352 = vsel %vm346, %v189, 4
  %v353 = vsel %vm347, %v189, 4
  %v354 = vsel %vm348, %v189, 4
  %v355 = vsel %vm349, %v189, 4
  %v356 = vsel %vm350, %v189, 4
  %v357 = vsel %vm351, %v189, 4
  %v358 = vsel %vm151, %v352, 2147483647
  %v359 = vand.u32 %v358, 65535
  %v360 = vshra.s32 %v358, 16
  %v361 = vcvt.s32.f32 %v359
  %v362 = vcvt.s32.f32 %v360
  %363 = vmin.xlane.f32.xlu0 %v362
  %v364 = vpop.xlane.xlu0 %363
  %vm365 = vcmp.eq.f32.partialorder %v362, %v364
  %v366 = vsel %vm365, %v361, inf
  %367 = vmin.xlane.f32.xlu0 %v366
  %v368 = vpop.xlane.xlu0 %367
  %v369 = vcvt.f32.s32 %v368
  %v370 = vcvt.f32.s32 %v364
  %v371 = vshll.u32 %v370, 16
  %v372 = vadd.s32 %v371, %v369
  %v373 = vsel %vm151, %v353, 2147483647
  %v374 = vand.u32 %v373, 65535
  %v375 = vshra.s32 %v373, 16
  %v376 = vcvt.s32.f32 %v374
  %v377 = vcvt.s32.f32 %v375
  %378 = vmin.xlane.f32.xlu0 %v377
  %v379 = vpop.xlane.xlu0 %378
  %vm380 = vcmp.eq.f32.partialorder %v377, %v379
  %v381 = vsel %vm380, %v376, inf
  %382 = vmin.xlane.f32.xlu0 %v381
  %v383 = vpop.xlane.xlu0 %382
  %v384 = vcvt.f32.s32 %v383
  %v385 = vcvt.f32.s32 %v379
  %v386 = vshll.u32 %v385, 16
  %v387 = vadd.s32 %v386, %v384
  %v388 = vsel %vm151, %v354, 2147483647
  %v389 = vand.u32 %v388, 65535
  %v390 = vshra.s32 %v388, 16
  %v391 = vcvt.s32.f32 %v389
  %v392 = vcvt.s32.f32 %v390
  %393 = vmin.xlane.f32.xlu0 %v392
  %v394 = vpop.xlane.xlu0 %393
  %vm395 = vcmp.eq.f32.partialorder %v392, %v394
  %v396 = vsel %vm395, %v391, inf
  %397 = vmin.xlane.f32.xlu0 %v396
  %v398 = vpop.xlane.xlu0 %397
  %v399 = vcvt.f32.s32 %v398
  %v400 = vcvt.f32.s32 %v394
  %v401 = vshll.u32 %v400, 16
  %v402 = vadd.s32 %v401, %v399
  %v403 = vsel %vm151, %v355, 2147483647
  %v404 = vand.u32 %v403, 65535
  %v405 = vshra.s32 %v403, 16
  %v406 = vcvt.s32.f32 %v404
  %v407 = vcvt.s32.f32 %v405
  %408 = vmin.xlane.f32.xlu0 %v407
  %v409 = vpop.xlane.xlu0 %408
  %vm410 = vcmp.eq.f32.partialorder %v407, %v409
  %v411 = vsel %vm410, %v406, inf
  %412 = vmin.xlane.f32.xlu0 %v411
  %v413 = vpop.xlane.xlu0 %412
  %v414 = vcvt.f32.s32 %v413
  %v415 = vcvt.f32.s32 %v409
  %v416 = vshll.u32 %v415, 16
  %v417 = vadd.s32 %v416, %v414
  %v418 = vsel %vm151, %v356, 2147483647
  %v419 = vand.u32 %v418, 65535
  %v420 = vshra.s32 %v418, 16
  %v421 = vcvt.s32.f32 %v419
  %v422 = vcvt.s32.f32 %v420
  %423 = vmin.xlane.f32.xlu0 %v422
  %v424 = vpop.xlane.xlu0 %423
  %vm425 = vcmp.eq.f32.partialorder %v422, %v424
  %v426 = vsel %vm425, %v421, inf
  %427 = vmin.xlane.f32.xlu0 %v426
  %v428 = vpop.xlane.xlu0 %427
  %v429 = vcvt.f32.s32 %v428
  %v430 = vcvt.f32.s32 %v424
  %v431 = vshll.u32 %v430, 16
  %v432 = vadd.s32 %v431, %v429
  %v433 = vsel %vm151, %v357, 2147483647
  %v434 = vand.u32 %v433, 65535
  %v435 = vshra.s32 %v433, 16
  %v436 = vcvt.s32.f32 %v434
  %v437 = vcvt.s32.f32 %v435
  %438 = vmin.xlane.f32.xlu0 %v437
  %v439 = vpop.xlane.xlu0 %438
  %vm440 = vcmp.eq.f32.partialorder %v437, %v439
  %v441 = vsel %vm440, %v436, inf
  %442 = vmin.xlane.f32.xlu0 %v441
  %v443 = vpop.xlane.xlu0 %442
  %v444 = vcvt.f32.s32 %v443
  %v445 = vcvt.f32.s32 %v439
  %v446 = vshll.u32 %v445, 16
  %v447 = vadd.s32 %v446, %v444
  %vm448 = vcmp.eq.s32.totalorder %v189, %v372
  %vm449 = vcmp.eq.s32.totalorder %v189, %v387
  %vm450 = vcmp.eq.s32.totalorder %v189, %v402
  %vm451 = vcmp.eq.s32.totalorder %v189, %v417
  %vm452 = vcmp.eq.s32.totalorder %v189, %v432
  %vm453 = vcmp.eq.s32.totalorder %v189, %v447
  %v454 = vsel %vm448, %v177, %v316
  %v455 = vsel %vm449, %v179, %v317
  %v456 = vsel %vm450, %v181, %v318
  %v457 = vsel %vm451, %v183, %v319
  %v458 = vsel %vm452, %v185, %v320
  %v459 = vsel %vm453, %v187, %v321
  %v460 = vsel %vm151, %v454, 0.0
  %461 = vadd.xlane.f32.xlu0 %v460
  %v462 = vpop.xlane.xlu0 %461
  %v463 = vsel %vm151, %v455, 0.0
  %464 = vadd.xlane.f32.xlu0 %v463
  %v465 = vpop.xlane.xlu0 %464
  %v466 = vsel %vm151, %v456, 0.0
  %467 = vadd.xlane.f32.xlu0 %v466
  %v468 = vpop.xlane.xlu0 %467
  %v469 = vsel %vm151, %v457, 0.0
  %470 = vadd.xlane.f32.xlu0 %v469
  %v471 = vpop.xlane.xlu0 %470
  %v472 = vsel %vm151, %v458, 0.0
  %473 = vadd.xlane.f32.xlu0 %v472
  %v474 = vpop.xlane.xlu0 %473
  %v475 = vsel %vm151, %v459, 0.0
  %476 = vadd.xlane.f32.xlu0 %v475
  %v477 = vpop.xlane.xlu0 %476
  %v478 = vrcp.pop %v462
  %v479 = vmul.f32 %v454, %v478
  %v480 = vrcp.pop %v465
  %v481 = vmul.f32 %v455, %v480
  %v482 = vrcp.pop %v468
  %v483 = vmul.f32 %v456, %v482
  %v484 = vrcp.pop %v471
  %v485 = vmul.f32 %v457, %v484
  %v486 = vrcp.pop %v474
  %v487 = vmul.f32 %v458, %v486
  %v488 = vrcp.pop %v477
  %v489 = vmul.f32 %v459, %v488
  %v490 = vld [vmem:[%s4] sm:$0xf]
  %v491 = vld [vmem:[%s3] sm:$0xff]
  %v492 = vld [vmem:[%s3 + $0x8] sm:$0xff]
  %v493 = vld [vmem:[%s3 + $0x10] sm:$0xff]
  %v494 = vld [vmem:[%s3 + $0x18] sm:$0xff]
  %495 = vmatprep.subr.mxu0 0.0
  %496 = vmatpush1.msra.mxu0 0.0
  %497 = vmatprep.subr.mxu0 0.0
  %498 = vmatpush1.msra.mxu0 0.0
  %499 = vmatprep.subr.mxu0 0.0
  %500 = vmatpush1.msra.mxu0 0.0
  %501 = vmatprep.subr.mxu0 0.0
  %502 = vmatpush1.msra.mxu0 0.0
  %503 = vmatprep.subr.mxu0 0.0
  %504 = vmatpush1.msra.mxu0 0.0
  %505 = vmatprep.subr.mxu0 0.0
  %506 = vmatpush1.msra.mxu0 0.0
  %507 = vmatprep.subr.mxu0 0.0
  %508 = vmatpush1.msra.mxu0 0.0
  %509 = vmatprep.subr.mxu0 0.0
  %510 = vmatpush1.msra.mxu0 0.0
  %511 = vmatprep.subr.mxu0 0.0
  %512 = vmatpush1.msra.mxu0 0.0
  %513 = vmatprep.subr.mxu0 0.0
  %514 = vmatpush1.msra.mxu0 0.0
  %515 = vmatprep.subr.mxu0 0.0
  %516 = vmatpush1.msra.mxu0 0.0
  %517 = vmatprep.subr.mxu0 0.0
  %518 = vmatpush1.msra.mxu0 0.0
  %519 = vmatprep.subr.mxu0 0.0
  %520 = vmatpush1.msra.mxu0 %v494
  %521 = vmatprep.subr.mxu0 0.0
  %522 = vmatpush1.msra.mxu0 %v493
  %523 = vmatprep.subr.mxu0 0.0
  %524 = vmatpush1.msra.mxu0 %v492
  %525 = vmatprep.subr.mxu0 0.0
  %526 = vmatpush1.msra.mxu0 %v491
  %527 = vmatprep.subr.mxu0 0.0
  %528 = vmatpush2.msra.mxu0 0.0
  %529 = vmatprep.subr.mxu0 0.0
  %530 = vmatpush2.msra.mxu0 0.0
  %531 = vmatprep.subr.mxu0 0.0
  %532 = vmatpush2.msra.mxu0 0.0
  %533 = vmatprep.subr.mxu0 0.0
  %534 = vmatpush2.msra.mxu0 0.0
  %535 = vmatprep.subr.mxu0 0.0
  %536 = vmatpush2.msra.mxu0 0.0
  %537 = vmatprep.subr.mxu0 0.0
  %538 = vmatpush2.msra.mxu0 0.0
  %539 = vmatprep.subr.mxu0 0.0
  %540 = vmatpush2.msra.mxu0 0.0
  %541 = vmatprep.subr.mxu0 0.0
  %542 = vmatpush2.msra.mxu0 0.0
  %543 = vmatprep.subr.mxu0 0.0
  %544 = vmatpush2.msra.mxu0 0.0
  %545 = vmatprep.subr.mxu0 0.0
  %546 = vmatpush2.msra.mxu0 0.0
  %547 = vmatprep.subr.mxu0 0.0
  %548 = vmatpush2.msra.mxu0 0.0
  %549 = vmatprep.subr.mxu0 0.0
  %550 = vmatpush2.msra.mxu0 0.0
  %551 = vmatprep.subr.mxu0 0.0
  %552 = vmatpush2.msra.mxu0 0.0
  %553 = vmatprep.subr.mxu0 0.0
  %554 = vmatpush2.msra.mxu0 0.0
  %555 = vmatprep.subr.mxu0 0.0
  %556 = vmatpush2.msra.mxu0 0.0
  %557 = vmatprep.subr.mxu0 0.0
  %558 = vmatpush2.msra.mxu0 0.0
  %559 = vmatprep.mubr.f32.mxu0 0.0
  %560 = vmatmul.mubr.f32.gmra.mxu0 %v39
  %v561 = vpop.f32.mrf.mxu0
  %v562 = vadd.f32 0.0, %v561
  %v563 = vpop.f32.mrf.mxu0
  %564 = vmatprep.mubr.f32.mxu0 0.0
  %565 = vmatmul.mubr.f32.gmra.mxu0 %v42
  %v566 = vpop.f32.mrf.mxu0
  %v567 = vadd.f32 0.0, %v566
  %v568 = vpop.f32.mrf.mxu0
  %569 = vmatprep.mubr.f32.mxu0 0.0
  %570 = vmatmul.mubr.f32.gmra.mxu0 %v45
  %v571 = vpop.f32.mrf.mxu0
  %v572 = vadd.f32 0.0, %v571
  %v573 = vpop.f32.mrf.mxu0
  %574 = vmatprep.mubr.f32.mxu0 0.0
  %575 = vmatmul.mubr.f32.gmra.mxu0 %v48
  %v576 = vpop.f32.mrf.mxu0
  %v577 = vadd.f32 0.0, %v576
  %v578 = vpop.f32.mrf.mxu0
  %579 = vmatprep.mubr.f32.mxu0 0.0
  %580 = vmatmul.mubr.f32.gmra.mxu0 %v51
  %v581 = vpop.f32.mrf.mxu0
  %v582 = vadd.f32 0.0, %v581
  %v583 = vpop.f32.mrf.mxu0
  %584 = vmatprep.mubr.f32.mxu0 0.0
  %585 = vmatmul.mubr.f32.gmra.mxu0 %v54
  %v586 = vpop.f32.mrf.mxu0
  %v587 = vadd.f32 0.0, %v586
  %v588 = vpop.f32.mrf.mxu0
  %589 = vdwg.mxu0
  %591 = vset.pattern.permute.xlu0 0
  %592 = vperm.xlu0 %591, %v479
  %v593 = vpop.permute.xlu0 %592
  %596 = vset.pattern.permute.xlu0 0
  %597 = vperm.xlu0 %596, %v481
  %v598 = vpop.permute.xlu0 %597
  %601 = vset.pattern.permute.xlu0 0
  %602 = vperm.xlu0 %601, %v483
  %v603 = vpop.permute.xlu0 %602
  %606 = vset.pattern.permute.xlu0 0
  %607 = vperm.xlu0 %606, %v485
  %v608 = vpop.permute.xlu0 %607
  %611 = vset.pattern.permute.xlu0 0
  %612 = vperm.xlu0 %611, %v487
  %v613 = vpop.permute.xlu0 %612
  %616 = vset.pattern.permute.xlu0 0
  %617 = vperm.xlu0 %616, %v489
  %v618 = vpop.permute.xlu0 %617
  %v620 = vmul.f32 %v593, %v562
  %v621 = vmul.f32 %v598, %v567
  %v622 = vmul.f32 %v603, %v572
  %v623 = vmul.f32 %v608, %v577
  %v624 = vmul.f32 %v613, %v582
  %v625 = vmul.f32 %v618, %v587
  %v626 = vsel %vm151, %v479, 0
  %v628 = vsel %vm151, %v481, 0
  %v630 = vsel %vm151, %v483, 0
  %v632 = vsel %vm151, %v485, 0
  %v634 = vsel %vm151, %v487, 0
  %v636 = vsel %vm151, %v489, 0
  %vm638 = vcmask 1043456
  %v640 = vsel %vm638, %v490, 0
  %642 = vmatprep.subr.mxu0 0.0
  %643 = vmatpush1.msra.mxu0 0.0
  %644 = vmatprep.subr.mxu0 0.0
  %645 = vmatpush1.msra.mxu0 0.0
  %646 = vmatprep.subr.mxu0 0.0
  %647 = vmatpush1.msra.mxu0 0.0
  %648 = vmatprep.subr.mxu0 0.0
  %649 = vmatpush1.msra.mxu0 0.0
  %650 = vmatprep.subr.mxu0 0.0
  %651 = vmatpush1.msra.mxu0 0.0
  %652 = vmatprep.subr.mxu0 0.0
  %653 = vmatpush1.msra.mxu0 0.0
  %654 = vmatprep.subr.mxu0 0.0
  %655 = vmatpush1.msra.mxu0 0.0
  %656 = vmatprep.subr.mxu0 0.0
  %657 = vmatpush1.msra.mxu0 0.0
  %658 = vmatprep.subr.mxu0 0.0
  %659 = vmatpush1.msra.mxu0 0.0
  %660 = vmatprep.subr.mxu0 0.0
  %661 = vmatpush1.msra.mxu0 0.0
  %662 = vmatprep.subr.mxu0 0.0
  %663 = vmatpush1.msra.mxu0 0.0
  %664 = vmatprep.subr.mxu0 0.0
  %665 = vmatpush1.msra.mxu0 0.0
  %666 = vmatprep.subr.mxu0 0.0
  %667 = vmatpush1.msra.mxu0 0.0
  %668 = vmatprep.subr.mxu0 0.0
  %669 = vmatpush1.msra.mxu0 0.0
  %670 = vmatprep.subr.mxu0 0.0
  %671 = vmatpush1.msra.mxu0 0.0
  %672 = vmatprep.subr.mxu0 0.0
  %673 = vmatpush1.msra.mxu0 %v640
  %674 = vmatprep.subr.mxu0 0.0
  %675 = vmatpush2.msra.mxu0 0.0
  %676 = vmatprep.subr.mxu0 0.0
  %677 = vmatpush2.msra.mxu0 0.0
  %678 = vmatprep.subr.mxu0 0.0
  %679 = vmatpush2.msra.mxu0 0.0
  %680 = vmatprep.subr.mxu0 0.0
  %681 = vmatpush2.msra.mxu0 0.0
  %682 = vmatprep.subr.mxu0 0.0
  %683 = vmatpush2.msra.mxu0 0.0
  %684 = vmatprep.subr.mxu0 0.0
  %685 = vmatpush2.msra.mxu0 0.0
  %686 = vmatprep.subr.mxu0 0.0
  %687 = vmatpush2.msra.mxu0 0.0
  %688 = vmatprep.subr.mxu0 0.0
  %689 = vmatpush2.msra.mxu0 0.0
  %690 = vmatprep.subr.mxu0 0.0
  %691 = vmatpush2.msra.mxu0 0.0
  %692 = vmatprep.subr.mxu0 0.0
  %693 = vmatpush2.msra.mxu0 0.0
  %694 = vmatprep.subr.mxu0 0.0
  %695 = vmatpush2.msra.mxu0 0.0
  %696 = vmatprep.subr.mxu0 0.0
  %697 = vmatpush2.msra.mxu0 0.0
  %698 = vmatprep.subr.mxu0 0.0
  %699 = vmatpush2.msra.mxu0 0.0
  %700 = vmatprep.subr.mxu0 0.0
  %701 = vmatpush2.msra.mxu0 0.0
  %702 = vmatprep.subr.mxu0 0.0
  %703 = vmatpush2.msra.mxu0 0.0
  %704 = vmatprep.subr.mxu0 0.0
  %705 = vmatpush2.msra.mxu0 0.0
  %706 = vmatprep.mubr.f32.mxu0 0.0
  %707 = vmatmul.mubr.f32.gmra.mxu0 %v626
  %v708 = vpop.f32.mrf.mxu0
  %v709 = vadd.f32 %v620, %v708
  %v710 = vpop.f32.mrf.mxu0
  %711 = vmatprep.mubr.f32.mxu0 0.0
  %712 = vmatmul.mubr.f32.gmra.mxu0 %v628
  %v713 = vpop.f32.mrf.mxu0
  %v714 = vadd.f32 %v621, %v713
  %v715 = vpop.f32.mrf.mxu0
  %716 = vmatprep.mubr.f32.mxu0 0.0
  %717 = vmatmul.mubr.f32.gmra.mxu0 %v630
  %v718 = vpop.f32.mrf.mxu0
  %v719 = vadd.f32 %v622, %v718
  %v720 = vpop.f32.mrf.mxu0
  %721 = vmatprep.mubr.f32.mxu0 0.0
  %722 = vmatmul.mubr.f32.gmra.mxu0 %v632
  %v723 = vpop.f32.mrf.mxu0
  %v724 = vadd.f32 %v623, %v723
  %v725 = vpop.f32.mrf.mxu0
  %726 = vmatprep.mubr.f32.mxu0 0.0
  %727 = vmatmul.mubr.f32.gmra.mxu0 %v634
  %v728 = vpop.f32.mrf.mxu0
  %v729 = vadd.f32 %v624, %v728
  %v730 = vpop.f32.mrf.mxu0
  %731 = vmatprep.mubr.f32.mxu0 0.0
  %732 = vmatmul.mubr.f32.gmra.mxu0 %v636
  %v733 = vpop.f32.mrf.mxu0
  %v734 = vadd.f32 %v625, %v733
  %v735 = vpop.f32.mrf.mxu0
  %736 = vdwg.mxu0
  %737 = vset.pattern.permute.xlu0 1
  %738 = vperm.xlu0 %737, %v479
  %v739 = vpop.permute.xlu0 %738
  %741 = vset.pattern.permute.xlu0 1
  %742 = vperm.xlu0 %741, %v481
  %v743 = vpop.permute.xlu0 %742
  %745 = vset.pattern.permute.xlu0 1
  %746 = vperm.xlu0 %745, %v483
  %v747 = vpop.permute.xlu0 %746
  %749 = vset.pattern.permute.xlu0 1
  %750 = vperm.xlu0 %749, %v485
  %v751 = vpop.permute.xlu0 %750
  %753 = vset.pattern.permute.xlu0 1
  %754 = vperm.xlu0 %753, %v487
  %v755 = vpop.permute.xlu0 %754
  %757 = vset.pattern.permute.xlu0 1
  %758 = vperm.xlu0 %757, %v489
  %v759 = vpop.permute.xlu0 %758
  %v761 = vmul.f32 %v739, %v562
  %v762 = vmul.f32 %v743, %v567
  %v763 = vmul.f32 %v747, %v572
  %v764 = vmul.f32 %v751, %v577
  %v765 = vmul.f32 %v755, %v582
  %v766 = vmul.f32 %v759, %v587
  %773 = vrot.lane.b32.xlu0 %v761, 96
  %v774 = vpop.permute.xlu0 %773
  %775 = vrot.lane.b32.xlu0 %v762, 96
  %v776 = vpop.permute.xlu0 %775
  %777 = vrot.lane.b32.xlu0 %v763, 96
  %v778 = vpop.permute.xlu0 %777
  %779 = vrot.lane.b32.xlu0 %v764, 96
  %v780 = vpop.permute.xlu0 %779
  %781 = vrot.lane.b32.xlu0 %v765, 96
  %v782 = vpop.permute.xlu0 %781
  %783 = vrot.lane.b32.xlu0 %v766, 96
  %v784 = vpop.permute.xlu0 %783
  %v791 = vadd.f32 %v709, %v774
  %v792 = vadd.f32 %v714, %v776
  %v793 = vadd.f32 %v719, %v778
  %v794 = vadd.f32 %v724, %v780
  %v795 = vadd.f32 %v729, %v782
  %v796 = vadd.f32 %v734, %v784
  %797 = vset.pattern.permute.xlu0 2
  %798 = vperm.xlu0 %797, %v479
  %v799 = vpop.permute.xlu0 %798
  %801 = vset.pattern.permute.xlu0 2
  %802 = vperm.xlu0 %801, %v481
  %v803 = vpop.permute.xlu0 %802
  %805 = vset.pattern.permute.xlu0 2
  %806 = vperm.xlu0 %805, %v483
  %v807 = vpop.permute.xlu0 %806
  %809 = vset.pattern.permute.xlu0 2
  %810 = vperm.xlu0 %809, %v485
  %v811 = vpop.permute.xlu0 %810
  %813 = vset.pattern.permute.xlu0 2
  %814 = vperm.xlu0 %813, %v487
  %v815 = vpop.permute.xlu0 %814
  %817 = vset.pattern.permute.xlu0 2
  %818 = vperm.xlu0 %817, %v489
  %v819 = vpop.permute.xlu0 %818
  %v821 = vmul.f32 %v799, %v562
  %v822 = vmul.f32 %v803, %v567
  %v823 = vmul.f32 %v807, %v572
  %v824 = vmul.f32 %v811, %v577
  %v825 = vmul.f32 %v815, %v582
  %v826 = vmul.f32 %v819, %v587
  %833 = vrot.lane.b32.xlu0 %v821, 64
  %v834 = vpop.permute.xlu0 %833
  %835 = vrot.lane.b32.xlu0 %v822, 64
  %v836 = vpop.permute.xlu0 %835
  %837 = vrot.lane.b32.xlu0 %v823, 64
  %v838 = vpop.permute.xlu0 %837
  %839 = vrot.lane.b32.xlu0 %v824, 64
  %v840 = vpop.permute.xlu0 %839
  %841 = vrot.lane.b32.xlu0 %v825, 64
  %v842 = vpop.permute.xlu0 %841
  %843 = vrot.lane.b32.xlu0 %v826, 64
  %v844 = vpop.permute.xlu0 %843
  %v851 = vadd.f32 %v791, %v834
  %v852 = vadd.f32 %v792, %v836
  %v853 = vadd.f32 %v793, %v838
  %v854 = vadd.f32 %v794, %v840
  %v855 = vadd.f32 %v795, %v842
  %v856 = vadd.f32 %v796, %v844
  %857 = vset.pattern.permute.xlu0 3
  %858 = vperm.xlu0 %857, %v479
  %v859 = vpop.permute.xlu0 %858
  %861 = vset.pattern.permute.xlu0 3
  %862 = vperm.xlu0 %861, %v481
  %v863 = vpop.permute.xlu0 %862
  %865 = vset.pattern.permute.xlu0 3
  %866 = vperm.xlu0 %865, %v483
  %v867 = vpop.permute.xlu0 %866
  %869 = vset.pattern.permute.xlu0 3
  %870 = vperm.xlu0 %869, %v485
  %v871 = vpop.permute.xlu0 %870
  %873 = vset.pattern.permute.xlu0 3
  %874 = vperm.xlu0 %873, %v487
  %v875 = vpop.permute.xlu0 %874
  %877 = vset.pattern.permute.xlu0 3
  %878 = vperm.xlu0 %877, %v489
  %v879 = vpop.permute.xlu0 %878
  %v881 = vmul.f32 %v859, %v562
  %v882 = vmul.f32 %v863, %v567
  %v883 = vmul.f32 %v867, %v572
  %v884 = vmul.f32 %v871, %v577
  %v885 = vmul.f32 %v875, %v582
  %v886 = vmul.f32 %v879, %v587
  %893 = vrot.lane.b32.xlu0 %v881, 32
  %v894 = vpop.permute.xlu0 %893
  %895 = vrot.lane.b32.xlu0 %v882, 32
  %v896 = vpop.permute.xlu0 %895
  %897 = vrot.lane.b32.xlu0 %v883, 32
  %v898 = vpop.permute.xlu0 %897
  %899 = vrot.lane.b32.xlu0 %v884, 32
  %v900 = vpop.permute.xlu0 %899
  %901 = vrot.lane.b32.xlu0 %v885, 32
  %v902 = vpop.permute.xlu0 %901
  %903 = vrot.lane.b32.xlu0 %v886, 32
  %v904 = vpop.permute.xlu0 %903
  %v911 = vadd.f32 %v851, %v894
  %v912 = vadd.f32 %v852, %v896
  %v913 = vadd.f32 %v853, %v898
  %v914 = vadd.f32 %v854, %v900
  %v915 = vadd.f32 %v855, %v902
  %v916 = vadd.f32 %v856, %v904
  %917 = vst.msk [vmem:[%s5] sm:$0xff] %vm37, %v911
  %918 = vst.msk [vmem:[%s5 + $0x8] sm:$0xff] %vm37, %v912
  %919 = vst.msk [vmem:[%s5 + $0x10] sm:$0xff] %vm37, %v913
  %920 = vst.msk [vmem:[%s5 + $0x18] sm:$0xff] %vm37, %v914
  %921 = vst.msk [vmem:[%s5 + $0x20] sm:$0xff] %vm37, %v915
  %922 = vst.msk [vmem:[%s5 + $0x28] sm:$0xff] %vm37, %v916
  // Predicated region
  $region22: #{tpu_custom_call.1} parent=0 // pred_check
    _
  $region23: #{tpu_custom_call.1} parent=0 // pred_check_branch
    %924 = sbr.rel (0) target = $region25
  $region24: #{tpu_custom_call.1} parent=0 // pred_region
    _
  $region25: #{tpu_custom_call.1} parent=0 // pred_fallthru
    _
  // Predicated region
  $region26: #{tpu_custom_call.1} parent=0 // pred_check
    _
  $region27: #{tpu_custom_call.1} parent=0 // pred_check_branch
    %926 = sbr.rel (0) target = $region29
  $region28: #{tpu_custom_call.1} parent=0 // pred_region
    _
  $region29: #{tpu_custom_call.1} parent=0 // pred_fallthru
    _

// kernel: tpu_custom_call.1
$region0: #{tpu_custom_call.1}
  #allocation0 [shape = 'u32[]', space=smem, size = 0x4, offset = 0x4, fixed_abs, tag = 'smem constant byte address 0x4 - core index']
  #allocation1 [shape = 'u32[144,128]{1,0:T(1,128)}', space=vmem, size = 0x12000, scoped, tag = 'internal scratch']
  %s0 = inlined_call_operand.vmem [shape: f32[48,32], index: 0, kind: input, shape index: {}]
  %s1 = inlined_call_operand.vmem [shape: f32[32,4], index: 1, kind: input, shape index: {}]
  %s2 = inlined_call_operand.vmem [shape: f32[1,4], index: 2, kind: input, shape index: {}]
  %s3 = inlined_call_operand.vmem [shape: f32[32,128], index: 3, kind: input, shape index: {}]
  %s4 = inlined_call_operand.vmem [shape: f32[4,32], index: 4, kind: input, shape index: {}]
  %s5 = inlined_call_operand.vmem [shape: f32[48,32], index: 5, kind: output, shape index: {}]
  %s6 = sld [smem:[#allocation0]]
  $region30: #{tpu_custom_call.1} parent=0
    _
  %s8 = ssub.s32 1, %s6
  %s9 = scalar_select 0, %s8, %s6
  // Predicated region
  $region2: #{tpu_custom_call.1} parent=0 // pred_check
    _
  $region3: #{tpu_custom_call.1} parent=0 // pred_check_branch
    %11 = sbr.rel (0) target = $region5
  $region4: #{tpu_custom_call.1} parent=0 // pred_region
    _
  $region5: #{tpu_custom_call.1} parent=0 // pred_fallthru
    _
  // Predicated region
  $region6: #{tpu_custom_call.1} parent=0 // pred_check
    _
  $region7: #{tpu_custom_call.1} parent=0 // pred_check_branch
    %13 = sbr.rel (0) target = $region9
  $region8: #{tpu_custom_call.1} parent=0 // pred_region
    _
  $region9: #{tpu_custom_call.1} parent=0 // pred_fallthru
    _
  // Predicated region
  $region10: #{tpu_custom_call.1} parent=0 // pred_check
    _
  $region11: #{tpu_custom_call.1} parent=0 // pred_check_branch
    %15 = sbr.rel (0) target = $region13
  $region12: #{tpu_custom_call.1} parent=0 // pred_region
    _
  $region13: #{tpu_custom_call.1} parent=0 // pred_fallthru
    _
  // Predicated region
  $region14: #{tpu_custom_call.1} parent=0 // pred_check
    _
  $region15: #{tpu_custom_call.1} parent=0 // pred_check_branch
    %17 = sbr.rel (0) target = $region17
  $region16: #{tpu_custom_call.1} parent=0 // pred_region
    _
  $region17: #{tpu_custom_call.1} parent=0 // pred_fallthru
    _
  // Predicated region
  $region18: #{tpu_custom_call.1} parent=0 // pred_check
    _
  $region19: #{tpu_custom_call.1} parent=0 // pred_check_branch
    %19 = sbr.rel (0) target = $region21
  $region20: #{tpu_custom_call.1} parent=0 // pred_region
    _
  $region21: #{tpu_custom_call.1} parent=0 // pred_fallthru
    _
  %v20 = vld [vmem:[%s0] sm:$0xff]
  %v21 = vld [vmem:[%s0 + $0x8] sm:$0xff]
  %v22 = vld [vmem:[%s0 + $0x10] sm:$0xff]
  %v23 = vld [vmem:[%s0 + $0x18] sm:$0xff]
  %v24 = vld [vmem:[%s0 + $0x20] sm:$0xff]
  %v25 = vld [vmem:[%s0 + $0x28] sm:$0xff]
  %v26 = vld [vmem:[%s1] sm:$0xff]
  %v27 = vld [vmem:[%s1 + $0x8] sm:$0xff]
  %v28 = vld [vmem:[%s1 + $0x10] sm:$0xff]
  %v29 = vld [vmem:[%s1 + $0x18] sm:$0xff]
  %v30 = vld [vmem:[%s2] sm:$0x1]
  %v32 = vlaneseq
  %v33 = vshrl.u32 %v32, 7
  %v34 = vsub.s32 0, %v33
  %v35 = vrot.slane %v30, %v34
  %vm37 = vcmask 261120
  %v39 = vsel %vm37, %v20, 0
  %v42 = vsel %vm37, %v21, 0
  %v45 = vsel %vm37, %v22, 0
  %v48 = vsel %vm37, %v23, 0
  %v51 = vsel %vm37, %v24, 0
  %v54 = vsel %vm37, %v25, 0
  %56 = vmatprep.subr.mxu0 0.0
  %57 = vmatpush1.msra.mxu0 0.0
  %58 = vmatprep.subr.mxu0 0.0
  %59 = vmatpush1.msra.mxu0 0.0
  %60 = vmatprep.subr.mxu0 0.0
  %61 = vmatpush1.msra.mxu0 0.0
  %62 = vmatprep.subr.mxu0 0.0
  %63 = vmatpush1.msra.mxu0 0.0
  %64 = vmatprep.subr.mxu0 0.0
  %65 = vmatpush1.msra.mxu0 0.0
  %66 = vmatprep.subr.mxu0 0.0
  %67 = vmatpush1.msra.mxu0 0.0
  %68 = vmatprep.subr.mxu0 0.0
  %69 = vmatpush1.msra.mxu0 0.0
  %70 = vmatprep.subr.mxu0 0.0
  %71 = vmatpush1.msra.mxu0 0.0
  %72 = vmatprep.subr.mxu0 0.0
  %73 = vmatpush1.msra.mxu0 0.0
  %74 = vmatprep.subr.mxu0 0.0
  %75 = vmatpush1.msra.mxu0 0.0
  %76 = vmatprep.subr.mxu0 0.0
  %77 = vmatpush1.msra.mxu0 0.0
  %78 = vmatprep.subr.mxu0 0.0
  %79 = vmatpush1.msra.mxu0 0.0
  %80 = vmatprep.subr.mxu0 0.0
  %81 = vmatpush1.msra.mxu0 %v29
  %82 = vmatprep.subr.mxu0 0.0
  %83 = vmatpush1.msra.mxu0 %v28
  %84 = vmatprep.subr.mxu0 0.0
  %85 = vmatpush1.msra.mxu0 %v27
  %86 = vmatprep.subr.mxu0 0.0
  %87 = vmatpush1.msra.mxu0 %v26
  %88 = vmatprep.subr.mxu0 0.0
  %89 = vmatpush2.msra.mxu0 0.0
  %90 = vmatprep.subr.mxu0 0.0
  %91 = vmatpush2.msra.mxu0 0.0
  %92 = vmatprep.subr.mxu0 0.0
  %93 = vmatpush2.msra.mxu0 0.0
  %94 = vmatprep.subr.mxu0 0.0
  %95 = vmatpush2.msra.mxu0 0.0
  %96 = vmatprep.subr.mxu0 0.0
  %97 = vmatpush2.msra.mxu0 0.0
  %98 = vmatprep.subr.mxu0 0.0
  %99 = vmatpush2.msra.mxu0 0.0
  %100 = vmatprep.subr.mxu0 0.0
  %101 = vmatpush2.msra.mxu0 0.0
  %102 = vmatprep.subr.mxu0 0.0
  %103 = vmatpush2.msra.mxu0 0.0
  %104 = vmatprep.subr.mxu0 0.0
  %105 = vmatpush2.msra.mxu0 0.0
  %106 = vmatprep.subr.mxu0 0.0
  %107 = vmatpush2.msra.mxu0 0.0
  %108 = vmatprep.subr.mxu0 0.0
  %109 = vmatpush2.msra.mxu0 0.0
  %110 = vmatprep.subr.mxu0 0.0
  %111 = vmatpush2.msra.mxu0 0.0
  %112 = vmatprep.subr.mxu0 0.0
  %113 = vmatpush2.msra.mxu0 0.0
  %114 = vmatprep.subr.mxu0 0.0
  %115 = vmatpush2.msra.mxu0 0.0
  %116 = vmatprep.subr.mxu0 0.0
  %117 = vmatpush2.msra.mxu0 0.0
  %118 = vmatprep.subr.mxu0 0.0
  %119 = vmatpush2.msra.mxu0 0.0
  %120 = vmatprep.mubr.f32.mxu0 0.0
  %121 = vmatmul.mubr.f32.gmra.mxu0 %v39
  %v122 = vpop.f32.mrf.mxu0
  %v123 = vadd.f32 %v35, %v122
  %v124 = vpop.f32.mrf.mxu0
  %125 = vmatprep.mubr.f32.mxu0 0.0
  %126 = vmatmul.mubr.f32.gmra.mxu0 %v42
  %v127 = vpop.f32.mrf.mxu0
  %v128 = vadd.f32 %v35, %v127
  %v129 = vpop.f32.mrf.mxu0
  %130 = vmatprep.mubr.f32.mxu0 0.0
  %131 = vmatmul.mubr.f32.gmra.mxu0 %v45
  %v132 = vpop.f32.mrf.mxu0
  %v133 = vadd.f32 %v35, %v132
  %v134 = vpop.f32.mrf.mxu0
  %135 = vmatprep.mubr.f32.mxu0 0.0
  %136 = vmatmul.mubr.f32.gmra.mxu0 %v48
  %v137 = vpop.f32.mrf.mxu0
  %v138 = vadd.f32 %v35, %v137
  %v139 = vpop.f32.mrf.mxu0
  %140 = vmatprep.mubr.f32.mxu0 0.0
  %141 = vmatmul.mubr.f32.gmra.mxu0 %v51
  %v142 = vpop.f32.mrf.mxu0
  %v143 = vadd.f32 %v35, %v142
  %v144 = vpop.f32.mrf.mxu0
  %145 = vmatprep.mubr.f32.mxu0 0.0
  %146 = vmatmul.mubr.f32.gmra.mxu0 %v54
  %v147 = vpop.f32.mrf.mxu0
  %v148 = vadd.f32 %v35, %v147
  %v149 = vpop.f32.mrf.mxu0
  %150 = vdwg.mxu0
  %vm151 = vcmask 31744
  %v152 = vsel %vm151, %v123, -inf
  %153 = vmax.xlane.f32.xlu0 %v152
  %v154 = vpop.xlane.xlu0 %153
  %v155 = vsel %vm151, %v128, -inf
  %156 = vmax.xlane.f32.xlu0 %v155
  %v157 = vpop.xlane.xlu0 %156
  %v158 = vsel %vm151, %v133, -inf
  %159 = vmax.xlane.f32.xlu0 %v158
  %v160 = vpop.xlane.xlu0 %159
  %v161 = vsel %vm151, %v138, -inf
  %162 = vmax.xlane.f32.xlu0 %v161
  %v163 = vpop.xlane.xlu0 %162
  %v164 = vsel %vm151, %v143, -inf
  %165 = vmax.xlane.f32.xlu0 %v164
  %v166 = vpop.xlane.xlu0 %165
  %v167 = vsel %vm151, %v148, -inf
  %168 = vmax.xlane.f32.xlu0 %v167
  %v169 = vpop.xlane.xlu0 %168
  %v170 = vsub.f32 %v123, %v154
  %v171 = vsub.f32 %v128, %v157
  %v172 = vsub.f32 %v133, %v160
  %v173 = vsub.f32 %v138, %v163
  %v174 = vsub.f32 %v143, %v166
  %v175 = vsub.f32 %v148, %v169
  %v176 = vmul.f32 %v170, 1.442695
  %v177 = vpow.pop %v176
  %v178 = vmul.f32 %v171, 1.442695
  %v179 = vpow.pop %v178
  %v180 = vmul.f32 %v172, 1.442695
  %v181 = vpow.pop %v180
  %v182 = vmul.f32 %v173, 1.442695
  %v183 = vpow.pop %v182
  %v184 = vmul.f32 %v174, 1.442695
  %v185 = vpow.pop %v184
  %v186 = vmul.f32 %v175, 1.442695
  %v187 = vpow.pop %v186
  %v188 = vlaneseq
  %v189 = vand.u32 %v188, 127
  %v190 = vsel %vm151, %v177, -inf
  %191 = vmax.xlane.f32.xlu0 %v190
  %v192 = vpop.xlane.xlu0 %191
  %v193 = vsel %vm151, %v179, -inf
  %194 = vmax.xlane.f32.xlu0 %v193
  %v195 = vpop.xlane.xlu0 %194
  %v196 = vsel %vm151, %v181, -inf
  %197 = vmax.xlane.f32.xlu0 %v196
  %v198 = vpop.xlane.xlu0 %197
  %v199 = vsel %vm151, %v183, -inf
  %200 = vmax.xlane.f32.xlu0 %v199
  %v201 = vpop.xlane.xlu0 %200
  %v202 = vsel %vm151, %v185, -inf
  %203 = vmax.xlane.f32.xlu0 %v202
  %v204 = vpop.xlane.xlu0 %203
  %v205 = vsel %vm151, %v187, -inf
  %206 = vmax.xlane.f32.xlu0 %v205
  %v207 = vpop.xlane.xlu0 %206
  %vm208 = vcmp.eq.f32.partialorder %v177, %v192
  %vm209 = vcmp.eq.f32.partialorder %v179, %v195
  %vm210 = vcmp.eq.f32.partialorder %v181, %v198
  %vm211 = vcmp.eq.f32.partialorder %v183, %v201
  %vm212 = vcmp.eq.f32.partialorder %v185, %v204
  %vm213 = vcmp.eq.f32.partialorder %v187, %v207
  %v214 = vsel %vm208, %v189, 4
  %v215 = vsel %vm209, %v189, 4
  %v216 = vsel %vm210, %v189, 4
  %v217 = vsel %vm211, %v189, 4
  %v218 = vsel %vm212, %v189, 4
  %v219 = vsel %vm213, %v189, 4
  %v220 = vsel %vm151, %v214, 2147483647
  %v221 = vand.u32 %v220, 65535
  %v222 = vshra.s32 %v220, 16
  %v223 = vcvt.s32.f32 %v221
  %v224 = vcvt.s32.f32 %v222
  %225 = vmin.xlane.f32.xlu0 %v224
  %v226 = vpop.xlane.xlu0 %225
  %vm227 = vcmp.eq.f32.partialorder %v224, %v226
  %v228 = vsel %vm227, %v223, inf
  %229 = vmin.xlane.f32.xlu0 %v228
  %v230 = vpop.xlane.xlu0 %229
  %v231 = vcvt.f32.s32 %v230
  %v232 = vcvt.f32.s32 %v226
  %v233 = vshll.u32 %v232, 16
  %v234 = vadd.s32 %v233, %v231
  %v235 = vsel %vm151, %v215, 2147483647
  %v236 = vand.u32 %v235, 65535
  %v237 = vshra.s32 %v235, 16
  %v238 = vcvt.s32.f32 %v236
  %v239 = vcvt.s32.f32 %v237
  %240 = vmin.xlane.f32.xlu0 %v239
  %v241 = vpop.xlane.xlu0 %240
  %vm242 = vcmp.eq.f32.partialorder %v239, %v241
  %v243 = vsel %vm242, %v238, inf
  %244 = vmin.xlane.f32.xlu0 %v243
  %v245 = vpop.xlane.xlu0 %244
  %v246 = vcvt.f32.s32 %v245
  %v247 = vcvt.f32.s32 %v241
  %v248 = vshll.u32 %v247, 16
  %v249 = vadd.s32 %v248, %v246
  %v250 = vsel %vm151, %v216, 2147483647
  %v251 = vand.u32 %v250, 65535
  %v252 = vshra.s32 %v250, 16
  %v253 = vcvt.s32.f32 %v251
  %v254 = vcvt.s32.f32 %v252
  %255 = vmin.xlane.f32.xlu0 %v254
  %v256 = vpop.xlane.xlu0 %255
  %vm257 = vcmp.eq.f32.partialorder %v254, %v256
  %v258 = vsel %vm257, %v253, inf
  %259 = vmin.xlane.f32.xlu0 %v258
  %v260 = vpop.xlane.xlu0 %259
  %v261 = vcvt.f32.s32 %v260
  %v262 = vcvt.f32.s32 %v256
  %v263 = vshll.u32 %v262, 16
  %v264 = vadd.s32 %v263, %v261
  %v265 = vsel %vm151, %v217, 2147483647
  %v266 = vand.u32 %v265, 65535
  %v267 = vshra.s32 %v265, 16
  %v268 = vcvt.s32.f32 %v266
  %v269 = vcvt.s32.f32 %v267
  %270 = vmin.xlane.f32.xlu0 %v269
  %v271 = vpop.xlane.xlu0 %270
  %vm272 = vcmp.eq.f32.partialorder %v269, %v271
  %v273 = vsel %vm272, %v268, inf
  %274 = vmin.xlane.f32.xlu0 %v273
  %v275 = vpop.xlane.xlu0 %274
  %v276 = vcvt.f32.s32 %v275
  %v277 = vcvt.f32.s32 %v271
  %v278 = vshll.u32 %v277, 16
  %v279 = vadd.s32 %v278, %v276
  %v280 = vsel %vm151, %v218, 2147483647
  %v281 = vand.u32 %v280, 65535
  %v282 = vshra.s32 %v280, 16
  %v283 = vcvt.s32.f32 %v281
  %v284 = vcvt.s32.f32 %v282
  %285 = vmin.xlane.f32.xlu0 %v284
  %v286 = vpop.xlane.xlu0 %285
  %vm287 = vcmp.eq.f32.partialorder %v284, %v286
  %v288 = vsel %vm287, %v283, inf
  %289 = vmin.xlane.f32.xlu0 %v288
  %v290 = vpop.xlane.xlu0 %289
  %v291 = vcvt.f32.s32 %v290
  %v292 = vcvt.f32.s32 %v286
  %v293 = vshll.u32 %v292, 16
  %v294 = vadd.s32 %v293, %v291
  %v295 = vsel %vm151, %v219, 2147483647
  %v296 = vand.u32 %v295, 65535
  %v297 = vshra.s32 %v295, 16
  %v298 = vcvt.s32.f32 %v296
  %v299 = vcvt.s32.f32 %v297
  %300 = vmin.xlane.f32.xlu0 %v299
  %v301 = vpop.xlane.xlu0 %300
  %vm302 = vcmp.eq.f32.partialorder %v299, %v301
  %v303 = vsel %vm302, %v298, inf
  %304 = vmin.xlane.f32.xlu0 %v303
  %v305 = vpop.xlane.xlu0 %304
  %v306 = vcvt.f32.s32 %v305
  %v307 = vcvt.f32.s32 %v301
  %v308 = vshll.u32 %v307, 16
  %v309 = vadd.s32 %v308, %v306
  %vm310 = vcmp.eq.s32.totalorder %v189, %v234
  %vm311 = vcmp.eq.s32.totalorder %v189, %v249
  %vm312 = vcmp.eq.s32.totalorder %v189, %v264
  %vm313 = vcmp.eq.s32.totalorder %v189, %v279
  %vm314 = vcmp.eq.s32.totalorder %v189, %v294
  %vm315 = vcmp.eq.s32.totalorder %v189, %v309
  %v316 = vsel %vm310, %v177, 0.0
  %v317 = vsel %vm311, %v179, 0.0
  %v318 = vsel %vm312, %v181, 0.0
  %v319 = vsel %vm313, %v183, 0.0
  %v320 = vsel %vm314, %v185, 0.0
  %v321 = vsel %vm315, %v187, 0.0
  %v322 = vsel %vm310, -inf, %v177
  %v323 = vsel %vm311, -inf, %v179
  %v324 = vsel %vm312, -inf, %v181
  %v325 = vsel %vm313, -inf, %v183
  %v326 = vsel %vm314, -inf, %v185
  %v327 = vsel %vm315, -inf, %v187
  %v328 = vsel %vm151, %v322, -inf
  %329 = vmax.xlane.f32.xlu0 %v328
  %v330 = vpop.xlane.xlu0 %329
  %v331 = vsel %vm151, %v323, -inf
  %332 = vmax.xlane.f32.xlu0 %v331
  %v333 = vpop.xlane.xlu0 %332
  %v334 = vsel %vm151, %v324, -inf
  %335 = vmax.xlane.f32.xlu0 %v334
  %v336 = vpop.xlane.xlu0 %335
  %v337 = vsel %vm151, %v325, -inf
  %338 = vmax.xlane.f32.xlu0 %v337
  %v339 = vpop.xlane.xlu0 %338
  %v340 = vsel %vm151, %v326, -inf
  %341 = vmax.xlane.f32.xlu0 %v340
  %v342 = vpop.xlane.xlu0 %341
  %v343 = vsel %vm151, %v327, -inf
  %344 = vmax.xlane.f32.xlu0 %v343
  %v345 = vpop.xlane.xlu0 %344
  %vm346 = vcmp.eq.f32.partialorder %v322, %v330
  %vm347 = vcmp.eq.f32.partialorder %v323, %v333
  %vm348 = vcmp.eq.f32.partialorder %v324, %v336
  %vm349 = vcmp.eq.f32.partialorder %v325, %v339
  %vm350 = vcmp.eq.f32.partialorder %v326, %v342
  %vm351 = vcmp.eq.f32.partialorder %v327, %v345
  %v352 = vsel %vm346, %v189, 4
  %v353 = vsel %vm347, %v189, 4
  %v354 = vsel %vm348, %v189, 4
  %v355 = vsel %vm349, %v189, 4
  %v356 = vsel %vm350, %v189, 4
  %v357 = vsel %vm351, %v189, 4
  %v358 = vsel %vm151, %v352, 2147483647
  %v359 = vand.u32 %v358, 65535
  %v360 = vshra.s32 %v358, 16
  %v361 = vcvt.s32.f32 %v359
  %v362 = vcvt.s32.f32 %v360
  %363 = vmin.xlane.f32.xlu0 %v362
  %v364 = vpop.xlane.xlu0 %363
  %vm365 = vcmp.eq.f32.partialorder %v362, %v364
  %v366 = vsel %vm365, %v361, inf
  %367 = vmin.xlane.f32.xlu0 %v366
  %v368 = vpop.xlane.xlu0 %367
  %v369 = vcvt.f32.s32 %v368
  %v370 = vcvt.f32.s32 %v364
  %v371 = vshll.u32 %v370, 16
  %v372 = vadd.s32 %v371, %v369
  %v373 = vsel %vm151, %v353, 2147483647
  %v374 = vand.u32 %v373, 65535
  %v375 = vshra.s32 %v373, 16
  %v376 = vcvt.s32.f32 %v374
  %v377 = vcvt.s32.f32 %v375
  %378 = vmin.xlane.f32.xlu0 %v377
  %v379 = vpop.xlane.xlu0 %378
  %vm380 = vcmp.eq.f32.partialorder %v377, %v379
  %v381 = vsel %vm380, %v376, inf
  %382 = vmin.xlane.f32.xlu0 %v381
  %v383 = vpop.xlane.xlu0 %382
  %v384 = vcvt.f32.s32 %v383
  %v385 = vcvt.f32.s32 %v379
  %v386 = vshll.u32 %v385, 16
  %v387 = vadd.s32 %v386, %v384
  %v388 = vsel %vm151, %v354, 2147483647
  %v389 = vand.u32 %v388, 65535
  %v390 = vshra.s32 %v388, 16
  %v391 = vcvt.s32.f32 %v389
  %v392 = vcvt.s32.f32 %v390
  %393 = vmin.xlane.f32.xlu0 %v392
  %v394 = vpop.xlane.xlu0 %393
  %vm395 = vcmp.eq.f32.partialorder %v392, %v394
  %v396 = vsel %vm395, %v391, inf
  %397 = vmin.xlane.f32.xlu0 %v396
  %v398 = vpop.xlane.xlu0 %397
  %v399 = vcvt.f32.s32 %v398
  %v400 = vcvt.f32.s32 %v394
  %v401 = vshll.u32 %v400, 16
  %v402 = vadd.s32 %v401, %v399
  %v403 = vsel %vm151, %v355, 2147483647
  %v404 = vand.u32 %v403, 65535
  %v405 = vshra.s32 %v403, 16
  %v406 = vcvt.s32.f32 %v404
  %v407 = vcvt.s32.f32 %v405
  %408 = vmin.xlane.f32.xlu0 %v407
  %v409 = vpop.xlane.xlu0 %408
  %vm410 = vcmp.eq.f32.partialorder %v407, %v409
  %v411 = vsel %vm410, %v406, inf
  %412 = vmin.xlane.f32.xlu0 %v411
  %v413 = vpop.xlane.xlu0 %412
  %v414 = vcvt.f32.s32 %v413
  %v415 = vcvt.f32.s32 %v409
  %v416 = vshll.u32 %v415, 16
  %v417 = vadd.s32 %v416, %v414
  %v418 = vsel %vm151, %v356, 2147483647
  %v419 = vand.u32 %v418, 65535
  %v420 = vshra.s32 %v418, 16
  %v421 = vcvt.s32.f32 %v419
  %v422 = vcvt.s32.f32 %v420
  %423 = vmin.xlane.f32.xlu0 %v422
  %v424 = vpop.xlane.xlu0 %423
  %vm425 = vcmp.eq.f32.partialorder %v422, %v424
  %v426 = vsel %vm425, %v421, inf
  %427 = vmin.xlane.f32.xlu0 %v426
  %v428 = vpop.xlane.xlu0 %427
  %v429 = vcvt.f32.s32 %v428
  %v430 = vcvt.f32.s32 %v424
  %v431 = vshll.u32 %v430, 16
  %v432 = vadd.s32 %v431, %v429
  %v433 = vsel %vm151, %v357, 2147483647
  %v434 = vand.u32 %v433, 65535
  %v435 = vshra.s32 %v433, 16
  %v436 = vcvt.s32.f32 %v434
  %v437 = vcvt.s32.f32 %v435
  %438 = vmin.xlane.f32.xlu0 %v437
  %v439 = vpop.xlane.xlu0 %438
  %vm440 = vcmp.eq.f32.partialorder %v437, %v439
  %v441 = vsel %vm440, %v436, inf
  %442 = vmin.xlane.f32.xlu0 %v441
  %v443 = vpop.xlane.xlu0 %442
  %v444 = vcvt.f32.s32 %v443
  %v445 = vcvt.f32.s32 %v439
  %v446 = vshll.u32 %v445, 16
  %v447 = vadd.s32 %v446, %v444
  %vm448 = vcmp.eq.s32.totalorder %v189, %v372
  %vm449 = vcmp.eq.s32.totalorder %v189, %v387
  %vm450 = vcmp.eq.s32.totalorder %v189, %v402
  %vm451 = vcmp.eq.s32.totalorder %v189, %v417
  %vm452 = vcmp.eq.s32.totalorder %v189, %v432
  %vm453 = vcmp.eq.s32.totalorder %v189, %v447
  %v454 = vsel %vm448, %v177, %v316
  %v455 = vsel %vm449, %v179, %v317
  %v456 = vsel %vm450, %v181, %v318
  %v457 = vsel %vm451, %v183, %v319
  %v458 = vsel %vm452, %v185, %v320
  %v459 = vsel %vm453, %v187, %v321
  %v460 = vsel %vm151, %v454, 0.0
  %461 = vadd.xlane.f32.xlu0 %v460
  %v462 = vpop.xlane.xlu0 %461
  %v463 = vsel %vm151, %v455, 0.0
  %464 = vadd.xlane.f32.xlu0 %v463
  %v465 = vpop.xlane.xlu0 %464
  %v466 = vsel %vm151, %v456, 0.0
  %467 = vadd.xlane.f32.xlu0 %v466
  %v468 = vpop.xlane.xlu0 %467
  %v469 = vsel %vm151, %v457, 0.0
  %470 = vadd.xlane.f32.xlu0 %v469
  %v471 = vpop.xlane.xlu0 %470
  %v472 = vsel %vm151, %v458, 0.0
  %473 = vadd.xlane.f32.xlu0 %v472
  %v474 = vpop.xlane.xlu0 %473
  %v475 = vsel %vm151, %v459, 0.0
  %476 = vadd.xlane.f32.xlu0 %v475
  %v477 = vpop.xlane.xlu0 %476
  %v478 = vrcp.pop %v462
  %v479 = vmul.f32 %v454, %v478
  %v480 = vrcp.pop %v465
  %v481 = vmul.f32 %v455, %v480
  %v482 = vrcp.pop %v468
  %v483 = vmul.f32 %v456, %v482
  %v484 = vrcp.pop %v471
  %v485 = vmul.f32 %v457, %v484
  %v486 = vrcp.pop %v474
  %v487 = vmul.f32 %v458, %v486
  %v488 = vrcp.pop %v477
  %v489 = vmul.f32 %v459, %v488
  %v490 = vld [vmem:[%s4] sm:$0xf]
  %v491 = vld [vmem:[%s3] sm:$0xff]
  %v492 = vld [vmem:[%s3 + $0x8] sm:$0xff]
  %v493 = vld [vmem:[%s3 + $0x10] sm:$0xff]
  %v494 = vld [vmem:[%s3 + $0x18] sm:$0xff]
  %495 = vmatprep.subr.mxu0 0.0
  %496 = vmatpush1.msra.mxu0 0.0
  %497 = vmatprep.subr.mxu0 0.0
  %498 = vmatpush1.msra.mxu0 0.0
  %499 = vmatprep.subr.mxu0 0.0
  %500 = vmatpush1.msra.mxu0 0.0
  %501 = vmatprep.subr.mxu0 0.0
  %502 = vmatpush1.msra.mxu0 0.0
  %503 = vmatprep.subr.mxu0 0.0
  %504 = vmatpush1.msra.mxu0 0.0
  %505 = vmatprep.subr.mxu0 0.0
  %506 = vmatpush1.msra.mxu0 0.0
  %507 = vmatprep.subr.mxu0 0.0
  %508 = vmatpush1.msra.mxu0 0.0
  %509 = vmatprep.subr.mxu0 0.0
  %510 = vmatpush1.msra.mxu0 0.0
  %511 = vmatprep.subr.mxu0 0.0
  %512 = vmatpush1.msra.mxu0 0.0
  %513 = vmatprep.subr.mxu0 0.0
  %514 = vmatpush1.msra.mxu0 0.0
  %515 = vmatprep.subr.mxu0 0.0
  %516 = vmatpush1.msra.mxu0 0.0
  %517 = vmatprep.subr.mxu0 0.0
  %518 = vmatpush1.msra.mxu0 0.0
  %519 = vmatprep.subr.mxu0 0.0
  %520 = vmatpush1.msra.mxu0 %v494
  %521 = vmatprep.subr.mxu0 0.0
  %522 = vmatpush1.msra.mxu0 %v493
  %523 = vmatprep.subr.mxu0 0.0
  %524 = vmatpush1.msra.mxu0 %v492
  %525 = vmatprep.subr.mxu0 0.0
  %526 = vmatpush1.msra.mxu0 %v491
  %527 = vmatprep.subr.mxu0 0.0
  %528 = vmatpush2.msra.mxu0 0.0
  %529 = vmatprep.subr.mxu0 0.0
  %530 = vmatpush2.msra.mxu0 0.0
  %531 = vmatprep.subr.mxu0 0.0
  %532 = vmatpush2.msra.mxu0 0.0
  %533 = vmatprep.subr.mxu0 0.0
  %534 = vmatpush2.msra.mxu0 0.0
  %535 = vmatprep.subr.mxu0 0.0
  %536 = vmatpush2.msra.mxu0 0.0
  %537 = vmatprep.subr.mxu0 0.0
  %538 = vmatpush2.msra.mxu0 0.0
  %539 = vmatprep.subr.mxu0 0.0
  %540 = vmatpush2.msra.mxu0 0.0
  %541 = vmatprep.subr.mxu0 0.0
  %542 = vmatpush2.msra.mxu0 0.0
  %543 = vmatprep.subr.mxu0 0.0
  %544 = vmatpush2.msra.mxu0 0.0
  %545 = vmatprep.subr.mxu0 0.0
  %546 = vmatpush2.msra.mxu0 0.0
  %547 = vmatprep.subr.mxu0 0.0
  %548 = vmatpush2.msra.mxu0 0.0
  %549 = vmatprep.subr.mxu0 0.0
  %550 = vmatpush2.msra.mxu0 0.0
  %551 = vmatprep.subr.mxu0 0.0
  %552 = vmatpush2.msra.mxu0 0.0
  %553 = vmatprep.subr.mxu0 0.0
  %554 = vmatpush2.msra.mxu0 0.0
  %555 = vmatprep.subr.mxu0 0.0
  %556 = vmatpush2.msra.mxu0 0.0
  %557 = vmatprep.subr.mxu0 0.0
  %558 = vmatpush2.msra.mxu0 0.0
  %559 = vmatprep.mubr.f32.mxu0 0.0
  %560 = vmatmul.mubr.f32.gmra.mxu0 %v39
  %v561 = vpop.f32.mrf.mxu0
  %v562 = vadd.f32 0.0, %v561
  %v563 = vpop.f32.mrf.mxu0
  %564 = vmatprep.mubr.f32.mxu0 0.0
  %565 = vmatmul.mubr.f32.gmra.mxu0 %v42
  %v566 = vpop.f32.mrf.mxu0
  %v567 = vadd.f32 0.0, %v566
  %v568 = vpop.f32.mrf.mxu0
  %569 = vmatprep.mubr.f32.mxu0 0.0
  %570 = vmatmul.mubr.f32.gmra.mxu0 %v45
  %v571 = vpop.f32.mrf.mxu0
  %v572 = vadd.f32 0.0, %v571
  %v573 = vpop.f32.mrf.mxu0
  %574 = vmatprep.mubr.f32.mxu0 0.0
  %575 = vmatmul.mubr.f32.gmra.mxu0 %v48
  %v576 = vpop.f32.mrf.mxu0
  %v577 = vadd.f32 0.0, %v576
  %v578 = vpop.f32.mrf.mxu0
  %579 = vmatprep.mubr.f32.mxu0 0.0
  %580 = vmatmul.mubr.f32.gmra.mxu0 %v51
  %v581 = vpop.f32.mrf.mxu0
  %v582 = vadd.f32 0.0, %v581
  %v583 = vpop.f32.mrf.mxu0
  %584 = vmatprep.mubr.f32.mxu0 0.0
  %585 = vmatmul.mubr.f32.gmra.mxu0 %v54
  %v586 = vpop.f32.mrf.mxu0
  %v587 = vadd.f32 0.0, %v586
  %v588 = vpop.f32.mrf.mxu0
  %589 = vdwg.mxu0
  %591 = vset.pattern.permute.xlu0 0
  %592 = vperm.xlu0 %591, %v479
  %v593 = vpop.permute.xlu0 %592
  %596 = vset.pattern.permute.xlu0 0
  %597 = vperm.xlu0 %596, %v481
  %v598 = vpop.permute.xlu0 %597
  %601 = vset.pattern.permute.xlu0 0
  %602 = vperm.xlu0 %601, %v483
  %v603 = vpop.permute.xlu0 %602
  %606 = vset.pattern.permute.xlu0 0
  %607 = vperm.xlu0 %606, %v485
  %v608 = vpop.permute.xlu0 %607
  %611 = vset.pattern.permute.xlu0 0
  %612 = vperm.xlu0 %611, %v487
  %v613 = vpop.permute.xlu0 %612
  %616 = vset.pattern.permute.xlu0 0
  %617 = vperm.xlu0 %616, %v489
  %v618 = vpop.permute.xlu0 %617
  %v620 = vmul.f32 %v593, %v562
  %v621 = vmul.f32 %v598, %v567
  %v622 = vmul.f32 %v603, %v572
  %v623 = vmul.f32 %v608, %v577
  %v624 = vmul.f32 %v613, %v582
  %v625 = vmul.f32 %v618, %v587
  %v626 = vsel %vm151, %v479, 0
  %v628 = vsel %vm151, %v481, 0
  %v630 = vsel %vm151, %v483, 0
  %v632 = vsel %vm151, %v485, 0
  %v634 = vsel %vm151, %v487, 0
  %v636 = vsel %vm151, %v489, 0
  %vm638 = vcmask 1043456
  %v640 = vsel %vm638, %v490, 0
  %642 = vmatprep.subr.mxu0 0.0
  %643 = vmatpush1.msra.mxu0 0.0
  %644 = vmatprep.subr.mxu0 0.0
  %645 = vmatpush1.msra.mxu0 0.0
  %646 = vmatprep.subr.mxu0 0.0
  %647 = vmatpush1.msra.mxu0 0.0
  %648 = vmatprep.subr.mxu0 0.0
  %649 = vmatpush1.msra.mxu0 0.0
  %650 = vmatprep.subr.mxu0 0.0
  %651 = vmatpush1.msra.mxu0 0.0
  %652 = vmatprep.subr.mxu0 0.0
  %653 = vmatpush1.msra.mxu0 0.0
  %654 = vmatprep.subr.mxu0 0.0
  %655 = vmatpush1.msra.mxu0 0.0
  %656 = vmatprep.subr.mxu0 0.0
  %657 = vmatpush1.msra.mxu0 0.0
  %658 = vmatprep.subr.mxu0 0.0
  %659 = vmatpush1.msra.mxu0 0.0
  %660 = vmatprep.subr.mxu0 0.0
  %661 = vmatpush1.msra.mxu0 0.0
  %662 = vmatprep.subr.mxu0 0.0
  %663 = vmatpush1.msra.mxu0 0.0
  %664 = vmatprep.subr.mxu0 0.0
  %665 = vmatpush1.msra.mxu0 0.0
  %666 = vmatprep.subr.mxu0 0.0
  %667 = vmatpush1.msra.mxu0 0.0
  %668 = vmatprep.subr.mxu0 0.0
  %669 = vmatpush1.msra.mxu0 0.0
  %670 = vmatprep.subr.mxu0 0.0
  %671 = vmatpush1.msra.mxu0 0.0
  %672 = vmatprep.subr.mxu0 0.0
  %673 = vmatpush1.msra.mxu0 %v640
  %674 = vmatprep.subr.mxu0 0.0
  %675 = vmatpush2.msra.mxu0 0.0
  %676 = vmatprep.subr.mxu0 0.0
  %677 = vmatpush2.msra.mxu0 0.0
  %678 = vmatprep.subr.mxu0 0.0
  %679 = vmatpush2.msra.mxu0 0.0
  %680 = vmatprep.subr.mxu0 0.0
  %681 = vmatpush2.msra.mxu0 0.0
  %682 = vmatprep.subr.mxu0 0.0
  %683 = vmatpush2.msra.mxu0 0.0
  %684 = vmatprep.subr.mxu0 0.0
  %685 = vmatpush2.msra.mxu0 0.0
  %686 = vmatprep.subr.mxu0 0.0
  %687 = vmatpush2.msra.mxu0 0.0
  %688 = vmatprep.subr.mxu0 0.0
  %689 = vmatpush2.msra.mxu0 0.0
  %690 = vmatprep.subr.mxu0 0.0
  %691 = vmatpush2.msra.mxu0 0.0
  %692 = vmatprep.subr.mxu0 0.0
  %693 = vmatpush2.msra.mxu0 0.0
  %694 = vmatprep.subr.mxu0 0.0
  %695 = vmatpush2.msra.mxu0 0.0
  %696 = vmatprep.subr.mxu0 0.0
  %697 = vmatpush2.msra.mxu0 0.0
  %698 = vmatprep.subr.mxu0 0.0
  %699 = vmatpush2.msra.mxu0 0.0
  %700 = vmatprep.subr.mxu0 0.0
  %701 = vmatpush2.msra.mxu0 0.0
  %702 = vmatprep.subr.mxu0 0.0
  %703 = vmatpush2.msra.mxu0 0.0
  %704 = vmatprep.subr.mxu0 0.0
  %705 = vmatpush2.msra.mxu0 0.0
  %706 = vmatprep.mubr.f32.mxu0 0.0
  %707 = vmatmul.mubr.f32.gmra.mxu0 %v626
  %v708 = vpop.f32.mrf.mxu0
  %v709 = vadd.f32 %v620, %v708
  %v710 = vpop.f32.mrf.mxu0
  %711 = vmatprep.mubr.f32.mxu0 0.0
  %712 = vmatmul.mubr.f32.gmra.mxu0 %v628
  %v713 = vpop.f32.mrf.mxu0
  %v714 = vadd.f32 %v621, %v713
  %v715 = vpop.f32.mrf.mxu0
  %716 = vmatprep.mubr.f32.mxu0 0.0
  %717 = vmatmul.mubr.f32.gmra.mxu0 %v630
  %v718 = vpop.f32.mrf.mxu0
  %v719 = vadd.f32 %v622, %v718
  %v720 = vpop.f32.mrf.mxu0
  %721 = vmatprep.mubr.f32.mxu0 0.0
  %722 = vmatmul.mubr.f32.gmra.mxu0 %v632
  %v723 = vpop.f32.mrf.mxu0
  %v724 = vadd.f32 %v623, %v723
  %v725 = vpop.f32.mrf.mxu0
  %726 = vmatprep.mubr.f32.mxu0 0.0
  %727 = vmatmul.mubr.f32.gmra.mxu0 %v634
  %v728 = vpop.f32.mrf.mxu0
  %v729 = vadd.f32 %v624, %v728
  %v730 = vpop.f32.mrf.mxu0
  %731 = vmatprep.mubr.f32.mxu0 0.0
  %732 = vmatmul.mubr.f32.gmra.mxu0 %v636
  %v733 = vpop.f32.mrf.mxu0
  %v734 = vadd.f32 %v625, %v733
  %v735 = vpop.f32.mrf.mxu0
  %736 = vdwg.mxu0
  %737 = vset.pattern.permute.xlu0 1
  %738 = vperm.xlu0 %737, %v479
  %v739 = vpop.permute.xlu0 %738
  %741 = vset.pattern.permute.xlu0 1
  %742 = vperm.xlu0 %741, %v481
  %v743 = vpop.permute.xlu0 %742
  %745 = vset.pattern.permute.xlu0 1
  %746 = vperm.xlu0 %745, %v483
  %v747 = vpop.permute.xlu0 %746
  %749 = vset.pattern.permute.xlu0 1
  %750 = vperm.xlu0 %749, %v485
  %v751 = vpop.permute.xlu0 %750
  %753 = vset.pattern.permute.xlu0 1
  %754 = vperm.xlu0 %753, %v487
  %v755 = vpop.permute.xlu0 %754
  %757 = vset.pattern.permute.xlu0 1
  %758 = vperm.xlu0 %757, %v489
  %v759 = vpop.permute.xlu0 %758
  %v761 = vmul.f32 %v739, %v562
  %v762 = vmul.f32 %v743, %v567
  %v763 = vmul.f32 %v747, %v572
  %v764 = vmul.f32 %v751, %v577
  %v765 = vmul.f32 %v755, %v582
  %v766 = vmul.f32 %v759, %v587
  %773 = vrot.lane.b32.xlu0 %v761, 96
  %v774 = vpop.permute.xlu0 %773
  %775 = vrot.lane.b32.xlu0 %v762, 96
  %v776 = vpop.permute.xlu0 %775
  %777 = vrot.lane.b32.xlu0 %v763, 96
  %v778 = vpop.permute.xlu0 %777
  %779 = vrot.lane.b32.xlu0 %v764, 96
  %v780 = vpop.permute.xlu0 %779
  %781 = vrot.lane.b32.xlu0 %v765, 96
  %v782 = vpop.permute.xlu0 %781
  %783 = vrot.lane.b32.xlu0 %v766, 96
  %v784 = vpop.permute.xlu0 %783
  %v791 = vadd.f32 %v709, %v774
  %v792 = vadd.f32 %v714, %v776
  %v793 = vadd.f32 %v719, %v778
  %v794 = vadd.f32 %v724, %v780
  %v795 = vadd.f32 %v729, %v782
  %v796 = vadd.f32 %v734, %v784
  %797 = vset.pattern.permute.xlu0 2
  %798 = vperm.xlu0 %797, %v479
  %v799 = vpop.permute.xlu0 %798
  %801 = vset.pattern.permute.xlu0 2
  %802 = vperm.xlu0 %801, %v481
  %v803 = vpop.permute.xlu0 %802
  %805 = vset.pattern.permute.xlu0 2
  %806 = vperm.xlu0 %805, %v483
  %v807 = vpop.permute.xlu0 %806
  %809 = vset.pattern.permute.xlu0 2
  %810 = vperm.xlu0 %809, %v485
  %v811 = vpop.permute.xlu0 %810
  %813 = vset.pattern.permute.xlu0 2
  %814 = vperm.xlu0 %813, %v487
  %v815 = vpop.permute.xlu0 %814
  %817 = vset.pattern.permute.xlu0 2
  %818 = vperm.xlu0 %817, %v489
  %v819 = vpop.permute.xlu0 %818
  %v821 = vmul.f32 %v799, %v562
  %v822 = vmul.f32 %v803, %v567
  %v823 = vmul.f32 %v807, %v572
  %v824 = vmul.f32 %v811, %v577
  %v825 = vmul.f32 %v815, %v582
  %v826 = vmul.f32 %v819, %v587
  %833 = vrot.lane.b32.xlu0 %v821, 64
  %v834 = vpop.permute.xlu0 %833
  %835 = vrot.lane.b32.xlu0 %v822, 64
  %v836 = vpop.permute.xlu0 %835
  %837 = vrot.lane.b32.xlu0 %v823, 64
  %v838 = vpop.permute.xlu0 %837
  %839 = vrot.lane.b32.xlu0 %v824, 64
  %v840 = vpop.permute.xlu0 %839
  %841 = vrot.lane.b32.xlu0 %v825, 64
  %v842 = vpop.permute.xlu0 %841
  %843 = vrot.lane.b32.xlu0 %v826, 64
  %v844 = vpop.permute.xlu0 %843
  %v851 = vadd.f32 %v791, %v834
  %v852 = vadd.f32 %v792, %v836
  %v853 = vadd.f32 %v793, %v838
  %v854 = vadd.f32 %v794, %v840
  %v855 = vadd.f32 %v795, %v842
  %v856 = vadd.f32 %v796, %v844
  %857 = vset.pattern.permute.xlu0 3
  %858 = vperm.xlu0 %857, %v479
  %v859 = vpop.permute.xlu0 %858
  %861 = vset.pattern.permute.xlu0 3
  %862 = vperm.xlu0 %861, %v481
  %v863 = vpop.permute.xlu0 %862
  %865 = vset.pattern.permute.xlu0 3
  %866 = vperm.xlu0 %865, %v483
  %v867 = vpop.permute.xlu0 %866
  %869 = vset.pattern.permute.xlu0 3
  %870 = vperm.xlu0 %869, %v485
  %v871 = vpop.permute.xlu0 %870
  %873 = vset.pattern.permute.xlu0 3
  %874 = vperm.xlu0 %873, %v487
  %v875 = vpop.permute.xlu0 %874
  %877 = vset.pattern.permute.xlu0 3
  %878 = vperm.xlu0 %877, %v489
  %v879 = vpop.permute.xlu0 %878
  %v881 = vmul.f32 %v859, %v562
  %v882 = vmul.f32 %v863, %v567
  %v883 = vmul.f32 %v867, %v572
  %v884 = vmul.f32 %v871, %v577
  %v885 = vmul.f32 %v875, %v582
  %v886 = vmul.f32 %v879, %v587
  %893 = vrot.lane.b32.xlu0 %v881, 32
  %v894 = vpop.permute.xlu0 %893
  %895 = vrot.lane.b32.xlu0 %v882, 32
  %v896 = vpop.permute.xlu0 %895
  %897 = vrot.lane.b32.xlu0 %v883, 32
  %v898 = vpop.permute.xlu0 %897
  %899 = vrot.lane.b32.xlu0 %v884, 32
  %v900 = vpop.permute.xlu0 %899
  %901 = vrot.lane.b32.xlu0 %v885, 32
  %v902 = vpop.permute.xlu0 %901
  %903 = vrot.lane.b32.xlu0 %v886, 32
  %v904 = vpop.permute.xlu0 %903
  %v911 = vadd.f32 %v851, %v894
  %v912 = vadd.f32 %v852, %v896
  %v913 = vadd.f32 %v853, %v898
  %v914 = vadd.f32 %v854, %v900
  %v915 = vadd.f32 %v855, %v902
  %v916 = vadd.f32 %v856, %v904
  %917 = vst.msk [vmem:[%s5] sm:$0xff] %vm37, %v911
  %918 = vst.msk [vmem:[%s5 + $0x8] sm:$0xff] %vm37, %v912
  %919 = vst.msk [vmem:[%s5 + $0x10] sm:$0xff] %vm37, %v913
  %920 = vst.msk [vmem:[%s5 + $0x18] sm:$0xff] %vm37, %v914
  %921 = vst.msk [vmem:[%s5 + $0x20] sm:$0xff] %vm37, %v915
  %922 = vst.msk [vmem:[%s5 + $0x28] sm:$0xff] %vm37, %v916
  // Predicated region
  $region22: #{tpu_custom_call.1} parent=0 // pred_check
    _
  $region23: #{tpu_custom_call.1} parent=0 // pred_check_branch
    %924 = sbr.rel (0) target = $region25
  $region24: #{tpu_custom_call.1} parent=0 // pred_region
    _
  $region25: #{tpu_custom_call.1} parent=0 // pred_fallthru
    _
  // Predicated region
  $region26: #{tpu_custom_call.1} parent=0 // pred_check
    _
  $region27: #{tpu_custom_call.1} parent=0 // pred_check_branch
    %926 = sbr.rel (0) target = $region29
  $region28: #{tpu_custom_call.1} parent=0 // pred_region
    _
  $region29: #{tpu_custom_call.1} parent=0 // pred_fallthru
    _

</llo_original>
